<compile_context>
chip_gen: v7x
topology: tpu7x:2x2x1
jax: 0.10.0
libtpu: 0.0.40
codegen_flags: <defaults>
</compile_context>

<pallas_src>
import functools

import jax
import jax.numpy as jnp
from jax.experimental import pallas as pl
from jax.experimental.pallas import tpu as pltpu


def char_rnn_kernel(emb_ref, h0_ref, wih_ref, whh_ref, b_ref, wfc_ref, bfc_ref,
                    out_ref, hN_ref, pre_ref, seq_ref):
    """One time-chunk of the multi-layer tanh RNN + output Linear.

    emb_ref : (Tc*Bp, Hp) bf16  embedded tokens for this chunk (time-major slab)
    h0_ref  : (L, Bp, Hp) f32   initial hidden (consumed only at chunk 0)
    wih_ref : (L, Hp, Hp) bf16  input->hidden weights, pre-transposed (x @ W)
    whh_ref : (L, Hp, Hp) bf16  hidden->hidden weights, pre-transposed (h @ W)
    b_ref   : (L, 1,  Hp) f32   fused bias (b_ih + b_hh)
    wfc_ref : (Hp, Op)    bf16  fc weight, pre-transposed
    bfc_ref : (1, Op)     f32   fc bias
    out_ref : (Tc*Bp, Op) f32   logits slab for this chunk
    hN_ref  : (L, Bp, Hp) f32   hidden state; constant index_map => carried
                                across chunks, written back to HBM at the end
    pre_ref : (Tc*Bp, Hp) f32   scratch: hoisted x @ Wih + b for current layer
    seq_ref : (Tc*Bp, Hp) f32   scratch: current layer's outputs for the chunk
    """
    c = pl.program_id(0)
    L, Bp, Hp = hN_ref.shape
    Tc = seq_ref.shape[0] // Bp

    @pl.when(c == 0)
    def _init():
        hN_ref[...] = h0_ref[...]

    for l in range(L):                           # static unroll over layers
        # layer-0 reads the embedded input directly (bf16, no cast needed)
        x = emb_ref[...] if l == 0 else seq_ref[...].astype(jnp.bfloat16)
        # hoisted input->hidden matmul + fused bias: ONE MXU op per layer/chunk,
        # result parked in VMEM scratch (bounds register pressure for big Tc)
        pre_ref[...] = (jnp.dot(x, wih_ref[l],
                                preferred_element_type=jnp.float32) + b_ref[l])
        whh = whh_ref[l]                         # (Hp, Hp) bf16
        h = hN_ref[l]                            # (Bp, Hp) f32 carried state
        for t in range(Tc):                      # serial recurrence, static unroll
            h = jnp.tanh(pre_ref[pl.ds(t * Bp, Bp), :]
                         + jnp.dot(h.astype(jnp.bfloat16), whh,
                                   preferred_element_type=jnp.float32))
            # aligned (8,128) f32 tile store; becomes next layer's input
            seq_ref[pl.ds(t * Bp, Bp), :] = h
        hN_ref[l] = h

    # final Linear on the whole chunk: one matmul + one unmasked lane-dense store
    out_ref[...] = (jnp.dot(seq_ref[...].astype(jnp.bfloat16), wfc_ref[...],
                            preferred_element_type=jnp.float32)
                    + bfc_ref[...])


def _round_up(x, m):
    return ((x + m - 1) // m) * m


def prepare_params(params):
    """One-time weight repacking: transpose for x@W, pad to (8,128)-aligned
    tiles, cast MXU operands (incl. embedding table) to bf16."""
    emb, wih, whh, bih, bhh, wfc, bfc = params
    L, H, _ = wih.shape
    O = wfc.shape[0]
    Hp, Op = _round_up(H, 128), _round_up(O, 128)

    wih_t = jnp.transpose(wih, (0, 2, 1))                      # for x @ W
    whh_t = jnp.transpose(whh, (0, 2, 1))                      # for h @ W
    wih_p = jnp.zeros((L, Hp, Hp), jnp.bfloat16).at[:, :H, :H].set(
        wih_t.astype(jnp.bfloat16))
    whh_p = jnp.zeros((L, Hp, Hp), jnp.bfloat16).at[:, :H, :H].set(
        whh_t.astype(jnp.bfloat16))
    b_p = jnp.zeros((L, 1, Hp), jnp.float32).at[:, 0, :H].set(bih + bhh)
    wfc_p = jnp.zeros((Hp, Op), jnp.bfloat16).at[:H, :O].set(
        wfc.T.astype(jnp.bfloat16))
    bfc_p = jnp.zeros((1, Op), jnp.float32).at[0, :O].set(bfc)
    return dict(emb_table=emb.astype(jnp.bfloat16), wih=wih_p, whh=whh_p,
                b=b_p, wfc=wfc_p, bfc=bfc_p, H=H, O=O, L=L, Hp=Hp, Op=Op)


def char_rnn_forward(prep, tokens, hidden, *, chunk=None):
    """Mirrors CharRNN.forward(input, hidden).

    tokens : (B, T) int32 indices
    hidden : (L, B, H) float32
    returns (logits (B, T, O), hidden (L, B, H))
    """
    B, T = tokens.shape
    H, O, L = prep["H"], prep["O"], prep["L"]
    Hp, Op = prep["Hp"], prep["Op"]
    Bp = _round_up(max(B, 8), 8)
    Tc = T if chunk is None else chunk
    assert T % Tc == 0, "sequence length must be divisible by the time chunk"
    n_chunks = T // Tc

    # embedding gathered directly in time-major bf16 layout, padded to tiles
    emb_tm = prep["emb_table"][tokens.T]                       # (T, B, H) bf16
    emb_p = jnp.pad(emb_tm, ((0, 0), (0, Bp - B), (0, Hp - H)))
    emb_slab = emb_p.reshape(T * Bp, Hp)                       # (T*Bp, Hp)

    h0_p = jnp.pad(hidden, ((0, 0), (0, Bp - B), (0, Hp - H)))

    # TODO(synk): for large batch, add a leading batch-chunk grid axis marked
    # "parallel" so v7x's two TensorCores each process half the batch.
    out_slab, hN_p = pl.pallas_call(
        char_rnn_kernel,
        out_shape=(
            jax.ShapeDtypeStruct((T * Bp, Op), jnp.float32),
            jax.ShapeDtypeStruct((L, Bp, Hp), jnp.float32),
        ),
        grid_spec=pltpu.PrefetchScalarGridSpec(
            num_scalar_prefetch=0,
            grid=(n_chunks,),
            in_specs=[
                pl.BlockSpec((Tc * Bp, Hp), lambda c: (c, 0)),     # emb chunk
                pl.BlockSpec((L, Bp, Hp), lambda c: (0, 0, 0)),    # h0 (resident)
                pl.BlockSpec((L, Hp, Hp), lambda c: (0, 0, 0)),    # Wih (resident)
                pl.BlockSpec((L, Hp, Hp), lambda c: (0, 0, 0)),    # Whh (resident)
                pl.BlockSpec((L, 1, Hp), lambda c: (0, 0, 0)),     # fused bias
                pl.BlockSpec((Hp, Op), lambda c: (0, 0)),          # Wfc
                pl.BlockSpec((1, Op), lambda c: (0, 0)),           # bfc
            ],
            out_specs=(
                pl.BlockSpec((Tc * Bp, Op), lambda c: (c, 0)),     # logits chunk
                pl.BlockSpec((L, Bp, Hp), lambda c: (0, 0, 0)),    # hidden carry
            ),
            scratch_shapes=[
                pltpu.VMEM((Tc * Bp, Hp), jnp.float32),            # pre-activations
                pltpu.VMEM((Tc * Bp, Hp), jnp.float32),            # layer outputs
            ],
        ),
        compiler_params=pltpu.CompilerParams(
            dimension_semantics=("arbitrary",),   # recurrence => serial chunks
            vmem_limit_bytes=32 * 1024 * 1024,
        ),
    )(emb_slab, h0_p, prep["wih"], prep["whh"], prep["b"], prep["wfc"],
      prep["bfc"])

    logits = jnp.transpose(out_slab.reshape(T, Bp, Op)[:, :B, :O], (1, 0, 2))
    h_final = hN_p[:, :B, :H]
    return logits, h_final


def reference_forward(params, tokens, hidden):
    """Pure-JAX f32 reference matching torch semantics (batch_first nn.RNN)."""
    emb_table, wih, whh, bih, bhh, wfc, bfc = params
    x = emb_table[tokens]                                      # (B, T, H)
    L = hidden.shape[0]
    T = x.shape[1]
    h_last = []
    for l in range(L):
        h = hidden[l]
        outs = []
        for t in range(T):
            h = jnp.tanh(x[:, t] @ wih[l].T + bih[l] + h @ whh[l].T + bhh[l])
            outs.append(h)
        x = jnp.stack(outs, axis=1)
        h_last.append(h)
    logits = x @ wfc.T + bfc
    return logits, jnp.stack(h_last, axis=0)


def init_params(key, input_size, hidden_size, output_size, num_layers):
    """Deterministic init mimicking PyTorch defaults (shapes identical)."""
    ks = jax.random.split(key, 7)
    k_rnn = 1.0 / jnp.sqrt(hidden_size)
    k_fc = 1.0 / jnp.sqrt(hidden_size)
    emb = jax.random.normal(ks[0], (input_size, hidden_size), jnp.float32)
    wih = jax.random.uniform(ks[1], (num_layers, hidden_size, hidden_size),
                             jnp.float32, -k_rnn, k_rnn)
    whh = jax.random.uniform(ks[2], (num_layers, hidden_size, hidden_size),
                             jnp.float32, -k_rnn, k_rnn)
    bih = jax.random.uniform(ks[3], (num_layers, hidden_size),
                             jnp.float32, -k_rnn, k_rnn)
    bhh = jax.random.uniform(ks[4], (num_layers, hidden_size),
                             jnp.float32, -k_rnn, k_rnn)
    wfc = jax.random.uniform(ks[5], (output_size, hidden_size),
                             jnp.float32, -k_fc, k_fc)
    bfc = jax.random.uniform(ks[6], (output_size,),
                             jnp.float32, -k_fc, k_fc)
    return (emb, wih, whh, bih, bhh, wfc, bfc)


if __name__ == "__main__":
    # small shapes consistent with the module
    VOCAB = 16          # input_size (and output_size, as in a char-level LM)
    HIDDEN = 32         # hidden_size
    OUT = 16            # output_size
    LAYERS = 2          # num_layers
    BATCH = 2
    SEQ = 8

    key = jax.random.PRNGKey(0)
    kp, kt = jax.random.split(key)
    params = init_params(kp, VOCAB, HIDDEN, OUT, LAYERS)
    prep = prepare_params(params)                  # one-time weight repacking

    tokens = jax.random.randint(kt, (BATCH, SEQ), 0, VOCAB, dtype=jnp.int32)
    hidden0 = jnp.zeros((LAYERS, BATCH, HIDDEN), jnp.float32)  # init_hidden

    # chunk=4 -> grid of 2 time-chunks, exercising the VMEM hidden-state carry;
    # jit fuses the embedding gather / pad glue with the pallas_call.
    fwd = jax.jit(functools.partial(char_rnn_forward, prep, chunk=4))
    logits, h_final = fwd(tokens, hidden0)
    logits = jax.block_until_ready(logits)
    h_final = jax.block_until_ready(h_final)

    ref_logits, ref_h = reference_forward(params, tokens, hidden0)

    assert logits.shape == (BATCH, SEQ, OUT)
    assert h_final.shape == (LAYERS, BATCH, HIDDEN)
    # bf16 MXU operands vs the pure-f32 reference => looser tolerance
    assert jnp.allclose(logits, ref_logits, atol=5e-2, rtol=5e-2), \
        float(jnp.max(jnp.abs(logits - ref_logits)))
    assert jnp.allclose(h_final, ref_h, atol=5e-2, rtol=5e-2), \
        float(jnp.max(jnp.abs(h_final - ref_h)))

    print("KERNEL_OK")
</pallas_src>

<mosaic_0001>
module attributes {stable_mosaic.version = 11 : i64} {
  func.func @char_rnn_kernel(%arg0: i32, %arg1: memref<32x128xbf16, #tpu.memory_space<vmem>>, %arg2: memref<2x8x128xf32, #tpu.memory_space<vmem>>, %arg3: memref<2x128x128xbf16, #tpu.memory_space<vmem>>, %arg4: memref<2x128x128xbf16, #tpu.memory_space<vmem>>, %arg5: memref<2x1x128xf32, #tpu.memory_space<vmem>>, %arg6: memref<128x128xbf16, #tpu.memory_space<vmem>>, %arg7: memref<1x128xf32, #tpu.memory_space<vmem>>, %arg8: memref<32x128xf32, #tpu.memory_space<vmem>>, %arg9: memref<2x8x128xf32, #tpu.memory_space<vmem>>, %arg10: memref<32x128xf32, #tpu.memory_space<vmem>>, %arg11: memref<32x128xf32, #tpu.memory_space<vmem>>) attributes {dimension_semantics = [#tpu.dimension_semantics<arbitrary>], iteration_bounds = array<i64: 2>, scalar_prefetch = 0 : i64, scratch_operands = 2 : i64, tpu.core_type = #tpu.core_type<tc>, window_params = [{transform_indices = @transform_0, window_bounds = array<i64: 32, 128>}, {pipeline_mode = #tpu.pipeline_mode<synchronous>, transform_indices = @transform_1, window_bounds = array<i64: 2, 8, 128>}, {pipeline_mode = #tpu.pipeline_mode<synchronous>, transform_indices = @transform_2, window_bounds = array<i64: 2, 128, 128>}, {pipeline_mode = #tpu.pipeline_mode<synchronous>, transform_indices = @transform_3, window_bounds = array<i64: 2, 128, 128>}, {pipeline_mode = #tpu.pipeline_mode<synchronous>, transform_indices = @transform_4, window_bounds = array<i64: 2, 1, 128>}, {pipeline_mode = #tpu.pipeline_mode<synchronous>, transform_indices = @transform_5, window_bounds = array<i64: 128, 128>}, {pipeline_mode = #tpu.pipeline_mode<synchronous>, transform_indices = @transform_6, window_bounds = array<i64: 1, 128>}, {transform_indices = @transform_7, window_bounds = array<i64: 32, 128>}, {pipeline_mode = #tpu.pipeline_mode<synchronous>, transform_indices = @transform_8, window_bounds = array<i64: 2, 8, 128>}]} {
    %c0_i32 = arith.constant 0 : i32
    %0 = arith.cmpi eq, %arg0, %c0_i32 : i32
    %1 = arith.extui %0 : i1 to i32
    %c0_i32_0 = arith.constant 0 : i32
    %2 = arith.cmpi ne, %1, %c0_i32_0 : i32
    scf.if %2 {
      %c0_84 = arith.constant 0 : index
      %c0_85 = arith.constant 0 : index
      %c0_86 = arith.constant 0 : index
      %92 = vector.load %arg2[%c0_84, %c0_85, %c0_86] : memref<2x8x128xf32, #tpu.memory_space<vmem>>, vector<2x8x128xf32>
      %c0_87 = arith.constant 0 : index
      %c0_88 = arith.constant 0 : index
      %c0_89 = arith.constant 0 : index
      %93 = vector.load %arg9[%c0_87, %c0_88, %c0_89] : memref<2x8x128xf32, #tpu.memory_space<vmem>>, vector<2x8x128xf32>
      tpu.vector_store %arg9[%c0_87, %c0_88, %c0_89], %92 {strides = array<i32>} : memref<2x8x128xf32, #tpu.memory_space<vmem>>, vector<2x8x128xf32>,
    } else {
    }
    %c0 = arith.constant 0 : index
    %c0_1 = arith.constant 0 : index
    %3 = vector.load %arg1[%c0, %c0_1] : memref<32x128xbf16, #tpu.memory_space<vmem>>, vector<32x128xbf16>
    %c0_2 = arith.constant 0 : index
    %c0_3 = arith.constant 0 : index
    %c0_4 = arith.constant 0 : index
    %4 = vector.load %arg3[%c0_2, %c0_3, %c0_4] : memref<2x128x128xbf16, #tpu.memory_space<vmem>>, vector<1x128x128xbf16>
    %5 = vector.shape_cast %4 : vector<1x128x128xbf16> to vector<128x128xbf16>
    %cst = arith.constant dense<0.000000e+00> : vector<32x128xf32>
    %6 = tpu.matmul %3, %5, %cst {dimension_numbers = #tpu.dot_dimension_numbers<[1], [0], [0], [1], [0, 0, 1, 1], [], []>} : vector<32x128xbf16>, vector<128x128xbf16>, vector<32x128xf32> -> vector<32x128xf32>
    %c0_5 = arith.constant 0 : index
    %c0_6 = arith.constant 0 : index
    %c0_7 = arith.constant 0 : index
    %7 = vector.load %arg5[%c0_5, %c0_6, %c0_7] : memref<2x1x128xf32, #tpu.memory_space<vmem>>, vector<1x1x128xf32>
    %8 = vector.shape_cast %7 : vector<1x1x128xf32> to vector<1x128xf32>
    %9 = vector.broadcast %8 : vector<1x128xf32> to vector<32x128xf32>
    %10 = arith.addf %6, %9 : vector<32x128xf32>
    %c0_8 = arith.constant 0 : index
    %c0_9 = arith.constant 0 : index
    %11 = vector.load %arg10[%c0_8, %c0_9] : memref<32x128xf32, #tpu.memory_space<vmem>>, vector<32x128xf32>
    tpu.vector_store %arg10[%c0_8, %c0_9], %10 {strides = array<i32>} : memref<32x128xf32, #tpu.memory_space<vmem>>, vector<32x128xf32>,
    %c0_10 = arith.constant 0 : index
    %c0_11 = arith.constant 0 : index
    %c0_12 = arith.constant 0 : index
    %12 = vector.load %arg4[%c0_10, %c0_11, %c0_12] : memref<2x128x128xbf16, #tpu.memory_space<vmem>>, vector<1x128x128xbf16>
    %13 = vector.shape_cast %12 : vector<1x128x128xbf16> to vector<128x128xbf16>
    %c0_13 = arith.constant 0 : index
    %c0_14 = arith.constant 0 : index
    %c0_15 = arith.constant 0 : index
    %14 = vector.load %arg9[%c0_13, %c0_14, %c0_15] : memref<2x8x128xf32, #tpu.memory_space<vmem>>, vector<1x8x128xf32>
    %15 = vector.shape_cast %14 : vector<1x8x128xf32> to vector<8x128xf32>
    %c0_16 = arith.constant 0 : index
    %c0_17 = arith.constant 0 : index
    %16 = vector.load %arg10[%c0_16, %c0_17] : memref<32x128xf32, #tpu.memory_space<vmem>>, vector<8x128xf32>
    %17 = arith.truncf %15 : vector<8x128xf32> to vector<8x128xbf16>
    %cst_18 = arith.constant dense<0.000000e+00> : vector<8x128xf32>
    %18 = tpu.matmul %17, %13, %cst_18 {dimension_numbers = #tpu.dot_dimension_numbers<[1], [0], [0], [1], [0, 0, 1, 1], [], []>} : vector<8x128xbf16>, vector<128x128xbf16>, vector<8x128xf32> -> vector<8x128xf32>
    %19 = arith.addf %16, %18 : vector<8x128xf32>
    %20 = math.tanh %19 : vector<8x128xf32>
    %c0_19 = arith.constant 0 : index
    %c0_20 = arith.constant 0 : index
    %21 = vector.load %arg11[%c0_19, %c0_20] : memref<32x128xf32, #tpu.memory_space<vmem>>, vector<8x128xf32>
    tpu.vector_store %arg11[%c0_19, %c0_20], %20 {strides = array<i32>} : memref<32x128xf32, #tpu.memory_space<vmem>>, vector<8x128xf32>,
    %c8 = arith.constant 8 : index
    %c0_21 = arith.constant 0 : index
    %22 = vector.load %arg10[%c8, %c0_21] : memref<32x128xf32, #tpu.memory_space<vmem>>, vector<8x128xf32>
    %23 = arith.truncf %20 : vector<8x128xf32> to vector<8x128xbf16>
    %cst_22 = arith.constant dense<0.000000e+00> : vector<8x128xf32>
    %24 = tpu.matmul %23, %13, %cst_22 {dimension_numbers = #tpu.dot_dimension_numbers<[1], [0], [0], [1], [0, 0, 1, 1], [], []>} : vector<8x128xbf16>, vector<128x128xbf16>, vector<8x128xf32> -> vector<8x128xf32>
    %25 = arith.addf %22, %24 : vector<8x128xf32>
    %26 = math.tanh %25 : vector<8x128xf32>
    %c8_23 = arith.constant 8 : index
    %c0_24 = arith.constant 0 : index
    %27 = vector.load %arg11[%c8_23, %c0_24] : memref<32x128xf32, #tpu.memory_space<vmem>>, vector<8x128xf32>
    tpu.vector_store %arg11[%c8_23, %c0_24], %26 {strides = array<i32>} : memref<32x128xf32, #tpu.memory_space<vmem>>, vector<8x128xf32>,
    %c16 = arith.constant 16 : index
    %c0_25 = arith.constant 0 : index
    %28 = vector.load %arg10[%c16, %c0_25] : memref<32x128xf32, #tpu.memory_space<vmem>>, vector<8x128xf32>
    %29 = arith.truncf %26 : vector<8x128xf32> to vector<8x128xbf16>
    %cst_26 = arith.constant dense<0.000000e+00> : vector<8x128xf32>
    %30 = tpu.matmul %29, %13, %cst_26 {dimension_numbers = #tpu.dot_dimension_numbers<[1], [0], [0], [1], [0, 0, 1, 1], [], []>} : vector<8x128xbf16>, vector<128x128xbf16>, vector<8x128xf32> -> vector<8x128xf32>
    %31 = arith.addf %28, %30 : vector<8x128xf32>
    %32 = math.tanh %31 : vector<8x128xf32>
    %c16_27 = arith.constant 16 : index
    %c0_28 = arith.constant 0 : index
    %33 = vector.load %arg11[%c16_27, %c0_28] : memref<32x128xf32, #tpu.memory_space<vmem>>, vector<8x128xf32>
    tpu.vector_store %arg11[%c16_27, %c0_28], %32 {strides = array<i32>} : memref<32x128xf32, #tpu.memory_space<vmem>>, vector<8x128xf32>,
    %c24 = arith.constant 24 : index
    %c0_29 = arith.constant 0 : index
    %34 = vector.load %arg10[%c24, %c0_29] : memref<32x128xf32, #tpu.memory_space<vmem>>, vector<8x128xf32>
    %35 = arith.truncf %32 : vector<8x128xf32> to vector<8x128xbf16>
    %cst_30 = arith.constant dense<0.000000e+00> : vector<8x128xf32>
    %36 = tpu.matmul %35, %13, %cst_30 {dimension_numbers = #tpu.dot_dimension_numbers<[1], [0], [0], [1], [0, 0, 1, 1], [], []>} : vector<8x128xbf16>, vector<128x128xbf16>, vector<8x128xf32> -> vector<8x128xf32>
    %37 = arith.addf %34, %36 : vector<8x128xf32>
    %38 = math.tanh %37 : vector<8x128xf32>
    %c24_31 = arith.constant 24 : index
    %c0_32 = arith.constant 0 : index
    %39 = vector.load %arg11[%c24_31, %c0_32] : memref<32x128xf32, #tpu.memory_space<vmem>>, vector<8x128xf32>
    tpu.vector_store %arg11[%c24_31, %c0_32], %38 {strides = array<i32>} : memref<32x128xf32, #tpu.memory_space<vmem>>, vector<8x128xf32>,
    %c0_33 = arith.constant 0 : index
    %c0_34 = arith.constant 0 : index
    %c0_35 = arith.constant 0 : index
    %40 = vector.load %arg9[%c0_33, %c0_34, %c0_35] : memref<2x8x128xf32, #tpu.memory_space<vmem>>, vector<1x8x128xf32>
    %41 = vector.shape_cast %40 : vector<1x8x128xf32> to vector<8x128xf32>
    %42 = vector.shape_cast %38 : vector<8x128xf32> to vector<1x8x128xf32>
    tpu.vector_store %arg9[%c0_33, %c0_34, %c0_35], %42 {strides = array<i32>} : memref<2x8x128xf32, #tpu.memory_space<vmem>>, vector<1x8x128xf32>,
    %c0_36 = arith.constant 0 : index
    %c0_37 = arith.constant 0 : index
    %43 = vector.load %arg11[%c0_36, %c0_37] : memref<32x128xf32, #tpu.memory_space<vmem>>, vector<32x128xf32>
    %44 = arith.truncf %43 : vector<32x128xf32> to vector<32x128xbf16>
    %c1 = arith.constant 1 : index
    %c0_38 = arith.constant 0 : index
    %c0_39 = arith.constant 0 : index
    %45 = vector.load %arg3[%c1, %c0_38, %c0_39] : memref<2x128x128xbf16, #tpu.memory_space<vmem>>, vector<1x128x128xbf16>
    %46 = vector.shape_cast %45 : vector<1x128x128xbf16> to vector<128x128xbf16>
    %cst_40 = arith.constant dense<0.000000e+00> : vector<32x128xf32>
    %47 = tpu.matmul %44, %46, %cst_40 {dimension_numbers = #tpu.dot_dimension_numbers<[1], [0], [0], [1], [0, 0, 1, 1], [], []>} : vector<32x128xbf16>, vector<128x128xbf16>, vector<32x128xf32> -> vector<32x128xf32>
    %c1_41 = arith.constant 1 : index
    %c0_42 = arith.constant 0 : index
    %c0_43 = arith.constant 0 : index
    %48 = vector.load %arg5[%c1_41, %c0_42, %c0_43] : memref<2x1x128xf32, #tpu.memory_space<vmem>>, vector<1x1x128xf32>
    %49 = vector.shape_cast %48 : vector<1x1x128xf32> to vector<1x128xf32>
    %50 = vector.broadcast %49 : vector<1x128xf32> to vector<32x128xf32>
    %51 = arith.addf %47, %50 : vector<32x128xf32>
    %c0_44 = arith.constant 0 : index
    %c0_45 = arith.constant 0 : index
    %52 = vector.load %arg10[%c0_44, %c0_45] : memref<32x128xf32, #tpu.memory_space<vmem>>, vector<32x128xf32>
    tpu.vector_store %arg10[%c0_44, %c0_45], %51 {strides = array<i32>} : memref<32x128xf32, #tpu.memory_space<vmem>>, vector<32x128xf32>,
    %c1_46 = arith.constant 1 : index
    %c0_47 = arith.constant 0 : index
    %c0_48 = arith.constant 0 : index
    %53 = vector.load %arg4[%c1_46, %c0_47, %c0_48] : memref<2x128x128xbf16, #tpu.memory_space<vmem>>, vector<1x128x128xbf16>
    %54 = vector.shape_cast %53 : vector<1x128x128xbf16> to vector<128x128xbf16>
    %c1_49 = arith.constant 1 : index
    %c0_50 = arith.constant 0 : index
    %c0_51 = arith.constant 0 : index
    %55 = vector.load %arg9[%c1_49, %c0_50, %c0_51] : memref<2x8x128xf32, #tpu.memory_space<vmem>>, vector<1x8x128xf32>
    %56 = vector.shape_cast %55 : vector<1x8x128xf32> to vector<8x128xf32>
    %c0_52 = arith.constant 0 : index
    %c0_53 = arith.constant 0 : index
    %57 = vector.load %arg10[%c0_52, %c0_53] : memref<32x128xf32, #tpu.memory_space<vmem>>, vector<8x128xf32>
    %58 = arith.truncf %56 : vector<8x128xf32> to vector<8x128xbf16>
    %cst_54 = arith.constant dense<0.000000e+00> : vector<8x128xf32>
    %59 = tpu.matmul %58, %54, %cst_54 {dimension_numbers = #tpu.dot_dimension_numbers<[1], [0], [0], [1], [0, 0, 1, 1], [], []>} : vector<8x128xbf16>, vector<128x128xbf16>, vector<8x128xf32> -> vector<8x128xf32>
    %60 = arith.addf %57, %59 : vector<8x128xf32>
    %61 = math.tanh %60 : vector<8x128xf32>
    %c0_55 = arith.constant 0 : index
    %c0_56 = arith.constant 0 : index
    %62 = vector.load %arg11[%c0_55, %c0_56] : memref<32x128xf32, #tpu.memory_space<vmem>>, vector<8x128xf32>
    tpu.vector_store %arg11[%c0_55, %c0_56], %61 {strides = array<i32>} : memref<32x128xf32, #tpu.memory_space<vmem>>, vector<8x128xf32>,
    %c8_57 = arith.constant 8 : index
    %c0_58 = arith.constant 0 : index
    %63 = vector.load %arg10[%c8_57, %c0_58] : memref<32x128xf32, #tpu.memory_space<vmem>>, vector<8x128xf32>
    %64 = arith.truncf %61 : vector<8x128xf32> to vector<8x128xbf16>
    %cst_59 = arith.constant dense<0.000000e+00> : vector<8x128xf32>
    %65 = tpu.matmul %64, %54, %cst_59 {dimension_numbers = #tpu.dot_dimension_numbers<[1], [0], [0], [1], [0, 0, 1, 1], [], []>} : vector<8x128xbf16>, vector<128x128xbf16>, vector<8x128xf32> -> vector<8x128xf32>
    %66 = arith.addf %63, %65 : vector<8x128xf32>
    %67 = math.tanh %66 : vector<8x128xf32>
    %c8_60 = arith.constant 8 : index
    %c0_61 = arith.constant 0 : index
    %68 = vector.load %arg11[%c8_60, %c0_61] : memref<32x128xf32, #tpu.memory_space<vmem>>, vector<8x128xf32>
    tpu.vector_store %arg11[%c8_60, %c0_61], %67 {strides = array<i32>} : memref<32x128xf32, #tpu.memory_space<vmem>>, vector<8x128xf32>,
    %c16_62 = arith.constant 16 : index
    %c0_63 = arith.constant 0 : index
    %69 = vector.load %arg10[%c16_62, %c0_63] : memref<32x128xf32, #tpu.memory_space<vmem>>, vector<8x128xf32>
    %70 = arith.truncf %67 : vector<8x128xf32> to vector<8x128xbf16>
    %cst_64 = arith.constant dense<0.000000e+00> : vector<8x128xf32>
    %71 = tpu.matmul %70, %54, %cst_64 {dimension_numbers = #tpu.dot_dimension_numbers<[1], [0], [0], [1], [0, 0, 1, 1], [], []>} : vector<8x128xbf16>, vector<128x128xbf16>, vector<8x128xf32> -> vector<8x128xf32>
    %72 = arith.addf %69, %71 : vector<8x128xf32>
    %73 = math.tanh %72 : vector<8x128xf32>
    %c16_65 = arith.constant 16 : index
    %c0_66 = arith.constant 0 : index
    %74 = vector.load %arg11[%c16_65, %c0_66] : memref<32x128xf32, #tpu.memory_space<vmem>>, vector<8x128xf32>
    tpu.vector_store %arg11[%c16_65, %c0_66], %73 {strides = array<i32>} : memref<32x128xf32, #tpu.memory_space<vmem>>, vector<8x128xf32>,
    %c24_67 = arith.constant 24 : index
    %c0_68 = arith.constant 0 : index
    %75 = vector.load %arg10[%c24_67, %c0_68] : memref<32x128xf32, #tpu.memory_space<vmem>>, vector<8x128xf32>
    %76 = arith.truncf %73 : vector<8x128xf32> to vector<8x128xbf16>
    %cst_69 = arith.constant dense<0.000000e+00> : vector<8x128xf32>
    %77 = tpu.matmul %76, %54, %cst_69 {dimension_numbers = #tpu.dot_dimension_numbers<[1], [0], [0], [1], [0, 0, 1, 1], [], []>} : vector<8x128xbf16>, vector<128x128xbf16>, vector<8x128xf32> -> vector<8x128xf32>
    %78 = arith.addf %75, %77 : vector<8x128xf32>
    %79 = math.tanh %78 : vector<8x128xf32>
    %c24_70 = arith.constant 24 : index
    %c0_71 = arith.constant 0 : index
    %80 = vector.load %arg11[%c24_70, %c0_71] : memref<32x128xf32, #tpu.memory_space<vmem>>, vector<8x128xf32>
    tpu.vector_store %arg11[%c24_70, %c0_71], %79 {strides = array<i32>} : memref<32x128xf32, #tpu.memory_space<vmem>>, vector<8x128xf32>,
    %c1_72 = arith.constant 1 : index
    %c0_73 = arith.constant 0 : index
    %c0_74 = arith.constant 0 : index
    %81 = vector.load %arg9[%c1_72, %c0_73, %c0_74] : memref<2x8x128xf32, #tpu.memory_space<vmem>>, vector<1x8x128xf32>
    %82 = vector.shape_cast %81 : vector<1x8x128xf32> to vector<8x128xf32>
    %83 = vector.shape_cast %79 : vector<8x128xf32> to vector<1x8x128xf32>
    tpu.vector_store %arg9[%c1_72, %c0_73, %c0_74], %83 {strides = array<i32>} : memref<2x8x128xf32, #tpu.memory_space<vmem>>, vector<1x8x128xf32>,
    %c0_75 = arith.constant 0 : index
    %c0_76 = arith.constant 0 : index
    %84 = vector.load %arg11[%c0_75, %c0_76] : memref<32x128xf32, #tpu.memory_space<vmem>>, vector<32x128xf32>
    %85 = arith.truncf %84 : vector<32x128xf32> to vector<32x128xbf16>
    %c0_77 = arith.constant 0 : index
    %c0_78 = arith.constant 0 : index
    %86 = vector.load %arg6[%c0_77, %c0_78] : memref<128x128xbf16, #tpu.memory_space<vmem>>, vector<128x128xbf16>
    %cst_79 = arith.constant dense<0.000000e+00> : vector<32x128xf32>
    %87 = tpu.matmul %85, %86, %cst_79 {dimension_numbers = #tpu.dot_dimension_numbers<[1], [0], [0], [1], [0, 0, 1, 1], [], []>} : vector<32x128xbf16>, vector<128x128xbf16>, vector<32x128xf32> -> vector<32x128xf32>
    %c0_80 = arith.constant 0 : index
    %c0_81 = arith.constant 0 : index
    %88 = vector.load %arg7[%c0_80, %c0_81] : memref<1x128xf32, #tpu.memory_space<vmem>>, vector<1x128xf32>
    %89 = vector.broadcast %88 : vector<1x128xf32> to vector<32x128xf32>
    %90 = arith.addf %87, %89 : vector<32x128xf32>
    %c0_82 = arith.constant 0 : index
    %c0_83 = arith.constant 0 : index
    %91 = vector.load %arg8[%c0_82, %c0_83] : memref<32x128xf32, #tpu.memory_space<vmem>>, vector<32x128xf32>
    tpu.vector_store %arg8[%c0_82, %c0_83], %90 {strides = array<i32>} : memref<32x128xf32, #tpu.memory_space<vmem>>, vector<32x128xf32>,
    return
  }
  func.func @transform_0(%arg0: i32) -> (i32, i32) {
    %c0_i32 = arith.constant 0 : i32
    %c0_i32_0 = arith.constant 0 : i32
    return %arg0, %c0_i32 : i32, i32
  }
  func.func @transform_1(%arg0: i32) -> (i32, i32, i32) {
    %c0_i32 = arith.constant 0 : i32
    %c0_i32_0 = arith.constant 0 : i32
    %c0_i32_1 = arith.constant 0 : i32
    %c0_i32_2 = arith.constant 0 : i32
    return %c0_i32, %c0_i32_0, %c0_i32_1 : i32, i32, i32
  }
  func.func @transform_2(%arg0: i32) -> (i32, i32, i32) {
    %c0_i32 = arith.constant 0 : i32
    %c0_i32_0 = arith.constant 0 : i32
    %c0_i32_1 = arith.constant 0 : i32
    %c0_i32_2 = arith.constant 0 : i32
    return %c0_i32, %c0_i32_0, %c0_i32_1 : i32, i32, i32
  }
  func.func @transform_3(%arg0: i32) -> (i32, i32, i32) {
    %c0_i32 = arith.constant 0 : i32
    %c0_i32_0 = arith.constant 0 : i32
    %c0_i32_1 = arith.constant 0 : i32
    %c0_i32_2 = arith.constant 0 : i32
    return %c0_i32, %c0_i32_0, %c0_i32_1 : i32, i32, i32
  }
  func.func @transform_4(%arg0: i32) -> (i32, i32, i32) {
    %c0_i32 = arith.constant 0 : i32
    %c0_i32_0 = arith.constant 0 : i32
    %c0_i32_1 = arith.constant 0 : i32
    %c0_i32_2 = arith.constant 0 : i32
    return %c0_i32, %c0_i32_0, %c0_i32_1 : i32, i32, i32
  }
  func.func @transform_5(%arg0: i32) -> (i32, i32) {
    %c0_i32 = arith.constant 0 : i32
    %c0_i32_0 = arith.constant 0 : i32
    %c0_i32_1 = arith.constant 0 : i32
    return %c0_i32, %c0_i32_0 : i32, i32
  }
  func.func @transform_6(%arg0: i32) -> (i32, i32) {
    %c0_i32 = arith.constant 0 : i32
    %c0_i32_0 = arith.constant 0 : i32
    %c0_i32_1 = arith.constant 0 : i32
    return %c0_i32, %c0_i32_0 : i32, i32
  }
  func.func @transform_7(%arg0: i32) -> (i32, i32) {
    %c0_i32 = arith.constant 0 : i32
    %c0_i32_0 = arith.constant 0 : i32
    return %arg0, %c0_i32 : i32, i32
  }
  func.func @transform_8(%arg0: i32) -> (i32, i32, i32) {
    %c0_i32 = arith.constant 0 : i32
    %c0_i32_0 = arith.constant 0 : i32
    %c0_i32_1 = arith.constant 0 : i32
    %c0_i32_2 = arith.constant 0 : i32
    return %c0_i32, %c0_i32_0, %c0_i32_1 : i32, i32, i32
  }
}

</mosaic_0001>

<llo_original>
// kernel: char_rnn_forward.1
$region0: #{char_rnn_forward.1}
  #allocation0 [shape = 'u32[]', space=smem, size = 0x4, offset = 0x4, fixed_abs, tag = 'smem constant byte address 0x4 - core index']
  #allocation1 [shape = 'u32[144,128]{1,0:T(1,128)}', space=vmem, size = 0x12000, scoped, tag = 'internal scratch']
  #allocation2 [shape = 'f32[32,128]{1,0:T(8,128)}', space=vmem, size = 0x4000, scoped, tag = 'scratch operand']
  #allocation3 [shape = 'f32[32,128]{1,0:T(8,128)}', space=vmem, size = 0x4000, scoped, tag = 'scratch operand']
  %s0 = inlined_call_operand.vmem [shape: bf16[64,128], index: 0, kind: input, shape index: {}]
  %s1 = inlined_call_operand.vmem [shape: f32[2,8,128], index: 1, kind: input, shape index: {}]
  %s2 = inlined_call_operand.hbm [shape: bf16[2,128,128], index: 2, kind: input, shape index: {}]
  %s3 = inlined_call_operand.vmem [shape: bf16[2,128,128], index: 3, kind: input, shape index: {}]
  %s4 = inlined_call_operand.vmem [shape: f32[2,1,128], index: 4, kind: input, shape index: {}]
  %s5 = inlined_call_operand.vmem [shape: bf16[128,128], index: 5, kind: input, shape index: {}]
  %s6 = inlined_call_operand.vmem [shape: f32[1,128], index: 6, kind: input, shape index: {}]
  %s7 = inlined_call_operand.vmem [shape: f32[64,128], index: 7, kind: output, shape index: {0}]
  %s8 = inlined_call_operand.vmem [shape: f32[2,8,128], index: 8, kind: output, shape index: {1}]
  %9 = xla_tuple %s7, %s8
  %s10 = sld [smem:[#allocation0]]
  $region77: #{char_rnn_forward.1} parent=0
    _
  %s12 = ssub.s32 1, %s10
  %s13 = scalar_select 0, %s12, %s10
  $region1: #{char_rnn_forward.1} parent=0
    #allocation4 [shape = 'u8[65536]{0}', space=vmem, size = 0x10000, scoped, tag = 'input window, operand 2, single buffered']
    #allocation5 [shape = 's32[2]{0}', space=sflag, size = 0x8, scoped, tag = 'scoped memory for char_rnn_forward.1']
    %14 = vsyncpa [#allocation5], 0
    loop: start=0, step=1, limit=4
    $region2: #{char_rnn_forward.1} parent=1 // loop_pre_header
      _
    $region3: #{char_rnn_forward.1} parent=1 // loop_header
      %s16 = sphi 0, %s20
      %p17 = scmp.ge.s32.totalorder %s16, 4
      %s26 = sphi 0, %s28
      %s29 = sphi 0, %s26
      %s30 = sphi 0, %s29
      %s46 = sphi 0, %s30
      %s50 = sphi 0, %s50
      %s52 = sphi 0, %s50
      %s53 = sphi 0, %s52
      %s67 = sphi 0, %s53
      %s71 = sphi 0, %s71
      %s73 = sphi 0, %s71
      %s74 = sphi 0, %s73
      %s88 = sphi 0, %s74
      %s92 = sphi 0, %s92
      %s94 = sphi 0, %s92
      %s95 = sphi 0, %s94
      %s109 = sphi 0, %s95
      %s113 = sphi 0, %s113
      %s115 = sphi 0, %s113
      %s116 = sphi 0, %s115
      %s130 = sphi 0, %s116
      %s134 = sphi 0, %s134
      %s136 = sphi 0, %s134
      %s137 = sphi 0, %s136
      %s151 = sphi 0, %s137
      %s155 = sphi 0, %s155
      %s157 = sphi 0, %s155
      %s158 = sphi 0, %s157
      %s172 = sphi 0, %s158
      %s178 = sphi 0, %s180
      %s181 = sphi 0, %s178
      %s182 = sphi 0, %s181
      %s198 = sphi 0, %s182
      %s202 = sphi 0, %s202
      %s204 = sphi 0, %s202
      %s205 = sphi 0, %s204
      %s219 = sphi 0, %s205
    $region4: #{char_rnn_forward.1} parent=1 // loop_header_branch
      %19 = sbr.rel (%p17) target = $region8
    $region5: #{char_rnn_forward.1} parent=1 // loop_body
      %s21 = ssub.s32 %s16, 1
      %s22 = ssub.s32 %s16, 2
      %s23 = sadd.s32 %s16, 1
      %s24 = ssub.s32 %s16, %s23
      %p25 = scmp.eq.s32.totalorder %s24, 0
      %s27 = sadd.s32 %s26, 1
      %s28 = scalar_select %p25, %s26, %s27
      %p31 = pneg %p25
      %p32 = scmp.eq.s32.totalorder %s16, 1
      %p33 = por %p31, %p32
      %p34 = scmp.ne.s32.totalorder %s26, %s29
      %p35 = scmp.eq.s32.totalorder %s16, 0
      %p36 = por %p34, %p35
      %p37 = scmp.ne.s32.totalorder %s26, %s29
      %p38 = scmp.eq.s32.totalorder %s21, 1
      %p39 = por %p37, %p38
      %p40 = scmp.ne.s32.totalorder %s29, %s30
      %p41 = scmp.eq.s32.totalorder %s21, 0
      %p42 = por %p40, %p41
      %p43 = scmp.ne.s32.totalorder %s29, %s30
      %p44 = scmp.eq.s32.totalorder %s22, 1
      %p45 = por %p43, %p44
      %p47 = scmp.ne.s32.totalorder %s30, %s46
      %p48 = scmp.eq.s32.totalorder %s22, 0
      %p49 = por %p47, %p48
      %s51 = sadd.s32 %s50, 1
      %p54 = scmp.eq.s32.totalorder %s16, 1
      %p55 = scmp.ne.s32.totalorder %s50, %s52
      %p56 = scmp.eq.s32.totalorder %s16, 0
      %p57 = por %p55, %p56
      %p58 = scmp.ne.s32.totalorder %s50, %s52
      %p59 = scmp.eq.s32.totalorder %s21, 1
      %p60 = por %p58, %p59
      %p61 = scmp.ne.s32.totalorder %s52, %s53
      %p62 = scmp.eq.s32.totalorder %s21, 0
      %p63 = por %p61, %p62
      %p64 = scmp.ne.s32.totalorder %s52, %s53
      %p65 = scmp.eq.s32.totalorder %s22, 1
      %p66 = por %p64, %p65
      %p68 = scmp.ne.s32.totalorder %s53, %s67
      %p69 = scmp.eq.s32.totalorder %s22, 0
      %p70 = por %p68, %p69
      %s72 = sadd.s32 %s71, 1
      %p75 = scmp.eq.s32.totalorder %s16, 1
      %p76 = scmp.ne.s32.totalorder %s71, %s73
      %p77 = scmp.eq.s32.totalorder %s16, 0
      %p78 = por %p76, %p77
      %p79 = scmp.ne.s32.totalorder %s71, %s73
      %p80 = scmp.eq.s32.totalorder %s21, 1
      %p81 = por %p79, %p80
      %p82 = scmp.ne.s32.totalorder %s73, %s74
      %p83 = scmp.eq.s32.totalorder %s21, 0
      %p84 = por %p82, %p83
      %p85 = scmp.ne.s32.totalorder %s73, %s74
      %p86 = scmp.eq.s32.totalorder %s22, 1
      %p87 = por %p85, %p86
      %p89 = scmp.ne.s32.totalorder %s74, %s88
      %p90 = scmp.eq.s32.totalorder %s22, 0
      %p91 = por %p89, %p90
      %s93 = sadd.s32 %s92, 1
      %p96 = scmp.eq.s32.totalorder %s16, 1
      %p97 = scmp.ne.s32.totalorder %s92, %s94
      %p98 = scmp.eq.s32.totalorder %s16, 0
      %p99 = por %p97, %p98
      %p100 = scmp.ne.s32.totalorder %s92, %s94
      %p101 = scmp.eq.s32.totalorder %s21, 1
      %p102 = por %p100, %p101
      %p103 = scmp.ne.s32.totalorder %s94, %s95
      %p104 = scmp.eq.s32.totalorder %s21, 0
      %p105 = por %p103, %p104
      %p106 = scmp.ne.s32.totalorder %s94, %s95
      %p107 = scmp.eq.s32.totalorder %s22, 1
      %p108 = por %p106, %p107
      %p110 = scmp.ne.s32.totalorder %s95, %s109
      %p111 = scmp.eq.s32.totalorder %s22, 0
      %p112 = por %p110, %p111
      %s114 = sadd.s32 %s113, 1
      %p117 = scmp.eq.s32.totalorder %s16, 1
      %p118 = scmp.ne.s32.totalorder %s113, %s115
      %p119 = scmp.eq.s32.totalorder %s16, 0
      %p120 = por %p118, %p119
      %p121 = scmp.ne.s32.totalorder %s113, %s115
      %p122 = scmp.eq.s32.totalorder %s21, 1
      %p123 = por %p121, %p122
      %p124 = scmp.ne.s32.totalorder %s115, %s116
      %p125 = scmp.eq.s32.totalorder %s21, 0
      %p126 = por %p124, %p125
      %p127 = scmp.ne.s32.totalorder %s115, %s116
      %p128 = scmp.eq.s32.totalorder %s22, 1
      %p129 = por %p127, %p128
      %p131 = scmp.ne.s32.totalorder %s116, %s130
      %p132 = scmp.eq.s32.totalorder %s22, 0
      %p133 = por %p131, %p132
      %s135 = sadd.s32 %s134, 1
      %p138 = scmp.eq.s32.totalorder %s16, 1
      %p139 = scmp.ne.s32.totalorder %s134, %s136
      %p140 = scmp.eq.s32.totalorder %s16, 0
      %p141 = por %p139, %p140
      %p142 = scmp.ne.s32.totalorder %s134, %s136
      %p143 = scmp.eq.s32.totalorder %s21, 1
      %p144 = por %p142, %p143
      %p145 = scmp.ne.s32.totalorder %s136, %s137
      %p146 = scmp.eq.s32.totalorder %s21, 0
      %p147 = por %p145, %p146
      %p148 = scmp.ne.s32.totalorder %s136, %s137
      %p149 = scmp.eq.s32.totalorder %s22, 1
      %p150 = por %p148, %p149
      %p152 = scmp.ne.s32.totalorder %s137, %s151
      %p153 = scmp.eq.s32.totalorder %s22, 0
      %p154 = por %p152, %p153
      %s156 = sadd.s32 %s155, 1
      %p159 = scmp.eq.s32.totalorder %s16, 1
      %p160 = scmp.ne.s32.totalorder %s155, %s157
      %p161 = scmp.eq.s32.totalorder %s16, 0
      %p162 = por %p160, %p161
      %p163 = scmp.ne.s32.totalorder %s155, %s157
      %p164 = scmp.eq.s32.totalorder %s21, 1
      %p165 = por %p163, %p164
      %p166 = scmp.ne.s32.totalorder %s157, %s158
      %p167 = scmp.eq.s32.totalorder %s21, 0
      %p168 = por %p166, %p167
      %p169 = scmp.ne.s32.totalorder %s157, %s158
      %p170 = scmp.eq.s32.totalorder %s22, 1
      %p171 = por %p169, %p170
      %p173 = scmp.ne.s32.totalorder %s158, %s172
      %p174 = scmp.eq.s32.totalorder %s22, 0
      %p175 = por %p173, %p174
      %s176 = ssub.s32 %s16, %s23
      %p177 = scmp.eq.s32.totalorder %s176, 0
      %s179 = sadd.s32 %s178, 1
      %s180 = scalar_select %p177, %s178, %s179
      %p183 = pneg %p177
      %p184 = scmp.eq.s32.totalorder %s16, 1
      %p185 = por %p183, %p184
      %p186 = scmp.ne.s32.totalorder %s178, %s181
      %p187 = scmp.eq.s32.totalorder %s16, 0
      %p188 = por %p186, %p187
      %p189 = scmp.ne.s32.totalorder %s178, %s181
      %p190 = scmp.eq.s32.totalorder %s21, 1
      %p191 = por %p189, %p190
      %p192 = scmp.ne.s32.totalorder %s181, %s182
      %p193 = scmp.eq.s32.totalorder %s21, 0
      %p194 = por %p192, %p193
      %p195 = scmp.ne.s32.totalorder %s181, %s182
      %p196 = scmp.eq.s32.totalorder %s22, 1
      %p197 = por %p195, %p196
      %p199 = scmp.ne.s32.totalorder %s182, %s198
      %p200 = scmp.eq.s32.totalorder %s22, 0
      %p201 = por %p199, %p200
      %s203 = sadd.s32 %s202, 1
      %p206 = scmp.eq.s32.totalorder %s16, 1
      %p207 = scmp.ne.s32.totalorder %s202, %s204
      %p208 = scmp.eq.s32.totalorder %s16, 0
      %p209 = por %p207, %p208
      %p210 = scmp.ne.s32.totalorder %s202, %s204
      %p211 = scmp.eq.s32.totalorder %s21, 1
      %p212 = por %p210, %p211
      %p213 = scmp.ne.s32.totalorder %s204, %s205
      %p214 = scmp.eq.s32.totalorder %s21, 0
      %p215 = por %p213, %p214
      %p216 = scmp.ne.s32.totalorder %s204, %s205
      %p217 = scmp.eq.s32.totalorder %s22, 1
      %p218 = por %p216, %p217
      %p220 = scmp.ne.s32.totalorder %s205, %s219
      %p221 = scmp.eq.s32.totalorder %s22, 0
      %p222 = por %p220, %p221
      %p223 = scmp.le.s32.totalorder 1, %s16
      %p224 = scmp.lt.s32.totalorder %s16, 3
      %p225 = pnand %p223, %p224
      %p226 = pneg %p225
      // Predicated region
      $region9: #{char_rnn_forward.1} parent=5 // pred_check
        _
      $region10: #{char_rnn_forward.1} parent=5 // pred_check_branch
        %228 = sbr.rel (%p225) target = $region12
      $region11: #{char_rnn_forward.1} parent=5 // pred_region
        %s229 = ssub.s32 %s16, 1
        // Predicated region
        $region13: #{char_rnn_forward.1} parent=11 // pred_check
          %p230 = pneg %p63
        $region14: #{char_rnn_forward.1} parent=11 // pred_check_branch
          %232 = sbr.rel (%p230) target = $region16
        $region15: #{char_rnn_forward.1} parent=11 // pred_region
          _
        $region16: #{char_rnn_forward.1} parent=11 // pred_fallthru
          _
        // Predicated region
        $region17: #{char_rnn_forward.1} parent=11 // pred_check
          %p233 = pneg %p84
        $region18: #{char_rnn_forward.1} parent=11 // pred_check_branch
          %235 = sbr.rel (%p233) target = $region20
        $region19: #{char_rnn_forward.1} parent=11 // pred_region
          %s237 = ssub.s32 2048, 2048
          %238 = vsyncadd [#allocation5], %s237
          %s239 = sshll.u32 [#allocation4], 4
          %s240 = int_to_ptr.vmem [resolvable:$true] %s239
          %245 = dma.hbm_to_vmem [thread:$0]  %s2, 2048, %s240, [#allocation5], 64, 64, 4
        $region20: #{char_rnn_forward.1} parent=11 // pred_fallthru
          _
        // Predicated region
        $region21: #{char_rnn_forward.1} parent=11 // pred_check
          %p246 = pneg %p105
        $region22: #{char_rnn_forward.1} parent=11 // pred_check_branch
          %248 = sbr.rel (%p246) target = $region24
        $region23: #{char_rnn_forward.1} parent=11 // pred_region
          _
        $region24: #{char_rnn_forward.1} parent=11 // pred_fallthru
          _
        // Predicated region
        $region25: #{char_rnn_forward.1} parent=11 // pred_check
          %p249 = pneg %p126
        $region26: #{char_rnn_forward.1} parent=11 // pred_check_branch
          %251 = sbr.rel (%p249) target = $region28
        $region27: #{char_rnn_forward.1} parent=11 // pred_region
          _
        $region28: #{char_rnn_forward.1} parent=11 // pred_fallthru
          _
        // Predicated region
        $region29: #{char_rnn_forward.1} parent=11 // pred_check
          %p252 = pneg %p147
        $region30: #{char_rnn_forward.1} parent=11 // pred_check_branch
          %254 = sbr.rel (%p252) target = $region32
        $region31: #{char_rnn_forward.1} parent=11 // pred_region
          _
        $region32: #{char_rnn_forward.1} parent=11 // pred_fallthru
          _
        // Predicated region
        $region33: #{char_rnn_forward.1} parent=11 // pred_check
          %p255 = pneg %p168
        $region34: #{char_rnn_forward.1} parent=11 // pred_check_branch
          %257 = sbr.rel (%p255) target = $region36
        $region35: #{char_rnn_forward.1} parent=11 // pred_region
          _
        $region36: #{char_rnn_forward.1} parent=11 // pred_fallthru
          _
      $region12: #{char_rnn_forward.1} parent=5 // pred_fallthru
        _
      %p258 = scmp.lt.s32.totalorder %s16, 2
      // Predicated region
      $region37: #{char_rnn_forward.1} parent=5 // pred_check
        %p259 = pneg %p258
      $region38: #{char_rnn_forward.1} parent=5 // pred_check_branch
        %261 = sbr.rel (%p259) target = $region40
      $region39: #{char_rnn_forward.1} parent=5 // pred_region
        // Predicated region
        $region41: #{char_rnn_forward.1} parent=39 // pred_check
          %p262 = pneg %p36
        $region42: #{char_rnn_forward.1} parent=39 // pred_check_branch
          %264 = sbr.rel (%p262) target = $region44
        $region43: #{char_rnn_forward.1} parent=39 // pred_region
          %s265 = smul.u32 4, %s16
          %p266 = scmp.lt.s32.totalorder %s265, 7
          %s267 = scalar_select %p266, %s265, 7
          %s268 = smul.addr %s267, 4
          %s269 = scalar_lea.vmem %s0, %s268
          %s270 = smul.u32 4, %s16
        $region44: #{char_rnn_forward.1} parent=39 // pred_fallthru
          _
      $region40: #{char_rnn_forward.1} parent=5 // pred_fallthru
        _
      %p271 = scmp.le.s32.totalorder 1, %s16
      %p272 = scmp.lt.s32.totalorder %s16, 3
      %p273 = pnand %p271, %p272
      %p274 = pneg %p273
      // Predicated region
      $region45: #{char_rnn_forward.1} parent=5 // pred_check
        _
      $region46: #{char_rnn_forward.1} parent=5 // pred_check_branch
        %276 = sbr.rel (%p273) target = $region48
      $region47: #{char_rnn_forward.1} parent=5 // pred_region
        %s277 = ssub.s32 %s16, 1
        // Predicated region
        $region49: #{char_rnn_forward.1} parent=47 // pred_check
          %p278 = pneg %p84
        $region50: #{char_rnn_forward.1} parent=47 // pred_check_branch
          %280 = sbr.rel (%p278) target = $region52
        $region51: #{char_rnn_forward.1} parent=47 // pred_region
          %281 = dma.done [#allocation5], 2048
        $region52: #{char_rnn_forward.1} parent=47 // pred_fallthru
          _
        %s282 = smul.u32 4, %s21
        %p283 = scmp.lt.s32.totalorder %s282, 7
        %s284 = scalar_select %p283, %s282, 7
        %s285 = smul.addr %s284, 4
        %s286 = scalar_lea.vmem %s0, %s285
        %p287 = pneg %p42
        %p288 = pneg %p39
        %p289 = pneg %p63
        %p290 = pneg %p60
        %p291 = pneg %p84
        %p292 = pneg %p81
        %p293 = pneg %p105
        %p294 = pneg %p102
        %p295 = pneg %p126
        %p296 = pneg %p123
        %p297 = pneg %p147
        %p298 = pneg %p144
        %p299 = pneg %p168
        %p300 = pneg %p165
        %p301 = pneg %p194
        %p302 = pneg %p191
        %s303 = smul.u32 4, %s21
        %p304 = scmp.lt.s32.totalorder %s303, 7
        %s305 = scalar_select %p304, %s303, 7
        %s306 = smul.addr %s305, 8
        %s307 = scalar_lea.vmem %s7, %s306
        %p308 = pneg %p215
        %p309 = pneg %p212
        %s310 = smul.u32 4, %s21
        %p311 = scmp.lt.s32.totalorder %s310, 7
        %s312 = scalar_select %p311, %s310, 7
        %s313 = smul.addr %s312, 4
        %s314 = scalar_lea.vmem %s0, %s313
        %s315 = smul.u32 4, %s21
        %s316 = smul.u32 4, %s21
        %p317 = scmp.lt.s32.totalorder %s316, 7
        %s318 = scalar_select %p317, %s316, 7
        %s319 = smul.addr %s318, 8
        %s320 = scalar_lea.vmem %s7, %s319
        %s321 = smul.u32 4, %s21
        %p323 = scmp.eq.s32.totalorder %s21, 0
        // Predicated region
        $region53: #{char_rnn_forward.1} parent=47 // pred_check
          %p324 = pneg %p323
        $region54: #{char_rnn_forward.1} parent=47 // pred_check_branch
          %326 = sbr.rel (%p324) target = $region56
        $region55: #{char_rnn_forward.1} parent=47 // pred_region
          %v327 = vld [vmem:[%s1] sm:$0xff]
          %v328 = vld [vmem:[%s1 + $0x8] sm:$0xff]
          %329 = vst [vmem:[%s8] sm:$0xff] %v327
          %330 = vst [vmem:[%s8 + $0x8] sm:$0xff] %v328
        $region56: #{char_rnn_forward.1} parent=47 // pred_fallthru
          _
        %v331 = vld [vmem:[%s314] sm:$0xf]
        %v332 = vld [vmem:[%s314 + $0x4] sm:$0xf]
        %v333 = vld [vmem:[%s314 + $0x8] sm:$0xf]
        %v334 = vld [vmem:[%s314 + $0xc] sm:$0xf]
        %v335 = vld [vmem:[#allocation4] sm:$0xf]
        %v336 = vld [vmem:[#allocation4 + $0x4] sm:$0xf]
        %v337 = vld [vmem:[#allocation4 + $0x8] sm:$0xf]
        %v338 = vld [vmem:[#allocation4 + $0xc] sm:$0xf]
        %v339 = vld [vmem:[#allocation4 + $0x10] sm:$0xf]
        %v340 = vld [vmem:[#allocation4 + $0x14] sm:$0xf]
        %v341 = vld [vmem:[#allocation4 + $0x18] sm:$0xf]
        %v342 = vld [vmem:[#allocation4 + $0x1c] sm:$0xf]
        %v343 = vld [vmem:[#allocation4 + $0x20] sm:$0xf]
        %v344 = vld [vmem:[#allocation4 + $0x24] sm:$0xf]
        %v345 = vld [vmem:[#allocation4 + $0x28] sm:$0xf]
        %v346 = vld [vmem:[#allocation4 + $0x2c] sm:$0xf]
        %v347 = vld [vmem:[#allocation4 + $0x30] sm:$0xf]
        %v348 = vld [vmem:[#allocation4 + $0x34] sm:$0xf]
        %v349 = vld [vmem:[#allocation4 + $0x38] sm:$0xf]
        %v350 = vld [vmem:[#allocation4 + $0x3c] sm:$0xf]
        %v351 = vld [vmem:[%s4] sm:$0x1]
        %v353 = vlaneseq
        %v354 = vshrl.u32 %v353, 7
        %v355 = vsub.s32 0, %v354
        %v356 = vrot.slane %v351, %v355
        %v362 = vunpack.c.l.b16 %v331
        %v363 = vunpack.c.l.b16 %v332
        %v364 = vunpack.c.l.b16 %v333
        %v365 = vunpack.c.l.b16 %v334
        %v366 = vpack.c.b16 %v363, %v362
        %v367 = vpack.c.b16 %v365, %v364
        %v386 = vunpack.c.l.b16 %v335
        %v387 = vunpack.c.l.b16 %v336
        %v388 = vunpack.c.l.b16 %v337
        %v389 = vunpack.c.l.b16 %v338
        %v390 = vunpack.c.l.b16 %v339
        %v391 = vunpack.c.l.b16 %v340
        %v392 = vunpack.c.l.b16 %v341
        %v393 = vunpack.c.l.b16 %v342
        %v394 = vunpack.c.l.b16 %v343
        %v395 = vunpack.c.l.b16 %v344
        %v396 = vunpack.c.l.b16 %v345
        %v397 = vunpack.c.l.b16 %v346
        %v398 = vunpack.c.l.b16 %v347
        %v399 = vunpack.c.l.b16 %v348
        %v400 = vunpack.c.l.b16 %v349
        %v401 = vunpack.c.l.b16 %v350
        %v402 = vpack.c.b16 %v387, %v386
        %v403 = vpack.c.b16 %v389, %v388
        %v404 = vpack.c.b16 %v391, %v390
        %v405 = vpack.c.b16 %v393, %v392
        %v406 = vpack.c.b16 %v395, %v394
        %v407 = vpack.c.b16 %v397, %v396
        %v408 = vpack.c.b16 %v399, %v398
        %v409 = vpack.c.b16 %v401, %v400
        %418 = vmatprep.subr.bf16.mxu0 0
        %419 = vmatpush1.bf16.msra.mxu0 %v402
        %420 = vmatprep.subr.bf16.mxu0 0
        %421 = vmatpush1.bf16.msra.mxu0 %v403
        %422 = vmatprep.subr.bf16.mxu0 0
        %423 = vmatpush1.bf16.msra.mxu0 %v404
        %424 = vmatprep.subr.bf16.mxu0 0
        %425 = vmatpush1.bf16.msra.mxu0 %v405
        %426 = vmatprep.subr.bf16.mxu0 0
        %427 = vmatpush1.bf16.msra.mxu0 %v406
        %428 = vmatprep.subr.bf16.mxu0 0
        %429 = vmatpush1.bf16.msra.mxu0 %v407
        %430 = vmatprep.subr.bf16.mxu0 0
        %431 = vmatpush1.bf16.msra.mxu0 %v408
        %432 = vmatprep.subr.bf16.mxu0 0
        %433 = vmatpush1.bf16.msra.mxu0 %v409
        %434 = vmatprep.subr.bf16.mxu0 0
        %435 = vmatpush1.bf16.msra.mxu0 0
        %436 = vmatprep.subr.bf16.mxu0 0
        %437 = vmatpush1.bf16.msra.mxu0 0
        %438 = vmatprep.subr.bf16.mxu0 0
        %439 = vmatpush1.bf16.msra.mxu0 0
        %440 = vmatprep.subr.bf16.mxu0 0
        %441 = vmatpush1.bf16.msra.mxu0 0
        %442 = vmatprep.subr.bf16.mxu0 0
        %443 = vmatpush1.bf16.msra.mxu0 0
        %444 = vmatprep.subr.bf16.mxu0 0
        %445 = vmatpush1.bf16.msra.mxu0 0
        %446 = vmatprep.subr.bf16.mxu0 0
        %447 = vmatpush1.bf16.msra.mxu0 0
        %448 = vmatprep.subr.bf16.mxu0 0
        %449 = vmatpush1.bf16.msra.mxu0 0
        %450 = vmatprep.mubr.bf16.mxu0 0
        %451 = vmatmul.mubr.bf16.gmra.mrb[0].mxu0 %v366
        %v452 = vpop.f32.mrb[0].mxu0
        %v453 = vadd.f32 %v356, %v452
        %v454 = vpop.f32.mrb[0].mxu0
        %v455 = vpop.f32.mrb[0].mxu0
        %v456 = vadd.f32 %v356, %v455
        %v457 = vpop.f32.mrb[0].mxu0
        %458 = vmatprep.mubr.bf16.mxu0 0
        %459 = vmatmul.mubr.bf16.gmra.mrb[0].mxu0 %v367
        %v460 = vpop.f32.mrb[0].mxu0
        %v461 = vadd.f32 %v356, %v460
        %v462 = vpop.f32.mrb[0].mxu0
        %v463 = vpop.f32.mrb[0].mxu0
        %v464 = vadd.f32 %v356, %v463
        %v465 = vpop.f32.mrb[0].mxu0
        %466 = vdwg.mxu0
        %467 = vst [vmem:[#allocation2] sm:$0xff] %v453
        %468 = vst [vmem:[#allocation2 + $0x8] sm:$0xff] %v456
        %469 = vst [vmem:[#allocation2 + $0x10] sm:$0xff] %v461
        %470 = vst [vmem:[#allocation2 + $0x18] sm:$0xff] %v464
        %v471 = vld [vmem:[%s3] sm:$0xf]
        %v472 = vld [vmem:[%s3 + $0x4] sm:$0xf]
        %v473 = vld [vmem:[%s3 + $0x8] sm:$0xf]
        %v474 = vld [vmem:[%s3 + $0xc] sm:$0xf]
        %v475 = vld [vmem:[%s3 + $0x10] sm:$0xf]
        %v476 = vld [vmem:[%s3 + $0x14] sm:$0xf]
        %v477 = vld [vmem:[%s3 + $0x18] sm:$0xf]
        %v478 = vld [vmem:[%s3 + $0x1c] sm:$0xf]
        %v479 = vld [vmem:[%s3 + $0x20] sm:$0xf]
        %v480 = vld [vmem:[%s3 + $0x24] sm:$0xf]
        %v481 = vld [vmem:[%s3 + $0x28] sm:$0xf]
        %v482 = vld [vmem:[%s3 + $0x2c] sm:$0xf]
        %v483 = vld [vmem:[%s3 + $0x30] sm:$0xf]
        %v484 = vld [vmem:[%s3 + $0x34] sm:$0xf]
        %v485 = vld [vmem:[%s3 + $0x38] sm:$0xf]
        %v486 = vld [vmem:[%s3 + $0x3c] sm:$0xf]
        %v487 = vld [vmem:[%s8] sm:$0xff]
        %v488 = vld [vmem:[#allocation2] sm:$0xff]
        %v489 = vpack.c.bf16 %v487, %v487
        %v506 = vunpack.c.l.b16 %v471
        %v507 = vunpack.c.l.b16 %v472
        %v508 = vunpack.c.l.b16 %v473
        %v509 = vunpack.c.l.b16 %v474
        %v510 = vunpack.c.l.b16 %v475
        %v511 = vunpack.c.l.b16 %v476
        %v512 = vunpack.c.l.b16 %v477
        %v513 = vunpack.c.l.b16 %v478
        %v514 = vunpack.c.l.b16 %v479
        %v515 = vunpack.c.l.b16 %v480
        %v516 = vunpack.c.l.b16 %v481
        %v517 = vunpack.c.l.b16 %v482
        %v518 = vunpack.c.l.b16 %v483
        %v519 = vunpack.c.l.b16 %v484
        %v520 = vunpack.c.l.b16 %v485
        %v521 = vunpack.c.l.b16 %v486
        %v522 = vpack.c.b16 %v507, %v506
        %v523 = vpack.c.b16 %v509, %v508
        %v524 = vpack.c.b16 %v511, %v510
        %v525 = vpack.c.b16 %v513, %v512
        %v526 = vpack.c.b16 %v515, %v514
        %v527 = vpack.c.b16 %v517, %v516
        %v528 = vpack.c.b16 %v519, %v518
        %v529 = vpack.c.b16 %v521, %v520
        %538 = vmatprep.subr.bf16.mxu0 0
        %539 = vmatpush1.bf16.msra.mxu0 %v522
        %540 = vmatprep.subr.bf16.mxu0 0
        %541 = vmatpush1.bf16.msra.mxu0 %v523
        %542 = vmatprep.subr.bf16.mxu0 0
        %543 = vmatpush1.bf16.msra.mxu0 %v524
        %544 = vmatprep.subr.bf16.mxu0 0
        %545 = vmatpush1.bf16.msra.mxu0 %v525
        %546 = vmatprep.subr.bf16.mxu0 0
        %547 = vmatpush1.bf16.msra.mxu0 %v526
        %548 = vmatprep.subr.bf16.mxu0 0
        %549 = vmatpush1.bf16.msra.mxu0 %v527
        %550 = vmatprep.subr.bf16.mxu0 0
        %551 = vmatpush1.bf16.msra.mxu0 %v528
        %552 = vmatprep.subr.bf16.mxu0 0
        %553 = vmatpush1.bf16.msra.mxu0 %v529
        %554 = vmatprep.subr.bf16.mxu0 0
        %555 = vmatpush1.bf16.msra.mxu0 0
        %556 = vmatprep.subr.bf16.mxu0 0
        %557 = vmatpush1.bf16.msra.mxu0 0
        %558 = vmatprep.subr.bf16.mxu0 0
        %559 = vmatpush1.bf16.msra.mxu0 0
        %560 = vmatprep.subr.bf16.mxu0 0
        %561 = vmatpush1.bf16.msra.mxu0 0
        %562 = vmatprep.subr.bf16.mxu0 0
        %563 = vmatpush1.bf16.msra.mxu0 0
        %564 = vmatprep.subr.bf16.mxu0 0
        %565 = vmatpush1.bf16.msra.mxu0 0
        %566 = vmatprep.subr.bf16.mxu0 0
        %567 = vmatpush1.bf16.msra.mxu0 0
        %568 = vmatprep.subr.bf16.mxu0 0
        %569 = vmatpush1.bf16.msra.mxu0 0
        %570 = vmatprep.mubr.bf16.mxu0 0
        %571 = vmatmul.mubr.bf16.gmra.mrb[0].mxu0 %v489
        %v572 = vpop.f32.mrb[0].mxu0
        %v573 = vadd.f32 0.0, %v572
        %v574 = vpop.f32.mrb[0].mxu0
        %v575 = vpop.f32.mrb[0].mxu0
        %v576 = vpop.f32.mrb[0].mxu0
        %577 = vdwg.mxu0
        %v578 = vadd.f32 %v488, %v573
        %v579 = vtanh.pop %v578
        %580 = vst [vmem:[#allocation3] sm:$0xff] %v579
        %v581 = vld [vmem:[#allocation2 + $0x8] sm:$0xff]
        %v582 = vpack.c.bf16 %v579, %v579
        %583 = vmatprep.subr.bf16.mxu0 0
        %584 = vmatpush1.bf16.msra.mxu0 %v522
        %585 = vmatprep.subr.bf16.mxu0 0
        %586 = vmatpush1.bf16.msra.mxu0 %v523
        %587 = vmatprep.subr.bf16.mxu0 0
        %588 = vmatpush1.bf16.msra.mxu0 %v524
        %589 = vmatprep.subr.bf16.mxu0 0
        %590 = vmatpush1.bf16.msra.mxu0 %v525
        %591 = vmatprep.subr.bf16.mxu0 0
        %592 = vmatpush1.bf16.msra.mxu0 %v526
        %593 = vmatprep.subr.bf16.mxu0 0
        %594 = vmatpush1.bf16.msra.mxu0 %v527
        %595 = vmatprep.subr.bf16.mxu0 0
        %596 = vmatpush1.bf16.msra.mxu0 %v528
        %597 = vmatprep.subr.bf16.mxu0 0
        %598 = vmatpush1.bf16.msra.mxu0 %v529
        %599 = vmatprep.subr.bf16.mxu0 0
        %600 = vmatpush1.bf16.msra.mxu0 0
        %601 = vmatprep.subr.bf16.mxu0 0
        %602 = vmatpush1.bf16.msra.mxu0 0
        %603 = vmatprep.subr.bf16.mxu0 0
        %604 = vmatpush1.bf16.msra.mxu0 0
        %605 = vmatprep.subr.bf16.mxu0 0
        %606 = vmatpush1.bf16.msra.mxu0 0
        %607 = vmatprep.subr.bf16.mxu0 0
        %608 = vmatpush1.bf16.msra.mxu0 0
        %609 = vmatprep.subr.bf16.mxu0 0
        %610 = vmatpush1.bf16.msra.mxu0 0
        %611 = vmatprep.subr.bf16.mxu0 0
        %612 = vmatpush1.bf16.msra.mxu0 0
        %613 = vmatprep.subr.bf16.mxu0 0
        %614 = vmatpush1.bf16.msra.mxu0 0
        %615 = vmatprep.mubr.bf16.mxu0 0
        %616 = vmatmul.mubr.bf16.gmra.mrb[0].mxu0 %v582
        %v617 = vpop.f32.mrb[0].mxu0
        %v618 = vadd.f32 0.0, %v617
        %v619 = vpop.f32.mrb[0].mxu0
        %v620 = vpop.f32.mrb[0].mxu0
        %v621 = vpop.f32.mrb[0].mxu0
        %622 = vdwg.mxu0
        %v623 = vadd.f32 %v581, %v618
        %v624 = vtanh.pop %v623
        %625 = vst [vmem:[#allocation3 + $0x8] sm:$0xff] %v624
        %v626 = vld [vmem:[#allocation2 + $0x10] sm:$0xff]
        %v627 = vpack.c.bf16 %v624, %v624
        %628 = vmatprep.subr.bf16.mxu0 0
        %629 = vmatpush1.bf16.msra.mxu0 %v522
        %630 = vmatprep.subr.bf16.mxu0 0
        %631 = vmatpush1.bf16.msra.mxu0 %v523
        %632 = vmatprep.subr.bf16.mxu0 0
        %633 = vmatpush1.bf16.msra.mxu0 %v524
        %634 = vmatprep.subr.bf16.mxu0 0
        %635 = vmatpush1.bf16.msra.mxu0 %v525
        %636 = vmatprep.subr.bf16.mxu0 0
        %637 = vmatpush1.bf16.msra.mxu0 %v526
        %638 = vmatprep.subr.bf16.mxu0 0
        %639 = vmatpush1.bf16.msra.mxu0 %v527
        %640 = vmatprep.subr.bf16.mxu0 0
        %641 = vmatpush1.bf16.msra.mxu0 %v528
        %642 = vmatprep.subr.bf16.mxu0 0
        %643 = vmatpush1.bf16.msra.mxu0 %v529
        %644 = vmatprep.subr.bf16.mxu0 0
        %645 = vmatpush1.bf16.msra.mxu0 0
        %646 = vmatprep.subr.bf16.mxu0 0
        %647 = vmatpush1.bf16.msra.mxu0 0
        %648 = vmatprep.subr.bf16.mxu0 0
        %649 = vmatpush1.bf16.msra.mxu0 0
        %650 = vmatprep.subr.bf16.mxu0 0
        %651 = vmatpush1.bf16.msra.mxu0 0
        %652 = vmatprep.subr.bf16.mxu0 0
        %653 = vmatpush1.bf16.msra.mxu0 0
        %654 = vmatprep.subr.bf16.mxu0 0
        %655 = vmatpush1.bf16.msra.mxu0 0
        %656 = vmatprep.subr.bf16.mxu0 0
        %657 = vmatpush1.bf16.msra.mxu0 0
        %658 = vmatprep.subr.bf16.mxu0 0
        %659 = vmatpush1.bf16.msra.mxu0 0
        %660 = vmatprep.mubr.bf16.mxu0 0
        %661 = vmatmul.mubr.bf16.gmra.mrb[0].mxu0 %v627
        %v662 = vpop.f32.mrb[0].mxu0
        %v663 = vadd.f32 0.0, %v662
        %v664 = vpop.f32.mrb[0].mxu0
        %v665 = vpop.f32.mrb[0].mxu0
        %v666 = vpop.f32.mrb[0].mxu0
        %667 = vdwg.mxu0
        %v668 = vadd.f32 %v626, %v663
        %v669 = vtanh.pop %v668
        %670 = vst [vmem:[#allocation3 + $0x10] sm:$0xff] %v669
        %v671 = vld [vmem:[#allocation2 + $0x18] sm:$0xff]
        %v672 = vpack.c.bf16 %v669, %v669
        %673 = vmatprep.subr.bf16.mxu0 0
        %674 = vmatpush1.bf16.msra.mxu0 %v522
        %675 = vmatprep.subr.bf16.mxu0 0
        %676 = vmatpush1.bf16.msra.mxu0 %v523
        %677 = vmatprep.subr.bf16.mxu0 0
        %678 = vmatpush1.bf16.msra.mxu0 %v524
        %679 = vmatprep.subr.bf16.mxu0 0
        %680 = vmatpush1.bf16.msra.mxu0 %v525
        %681 = vmatprep.subr.bf16.mxu0 0
        %682 = vmatpush1.bf16.msra.mxu0 %v526
        %683 = vmatprep.subr.bf16.mxu0 0
        %684 = vmatpush1.bf16.msra.mxu0 %v527
        %685 = vmatprep.subr.bf16.mxu0 0
        %686 = vmatpush1.bf16.msra.mxu0 %v528
        %687 = vmatprep.subr.bf16.mxu0 0
        %688 = vmatpush1.bf16.msra.mxu0 %v529
        %689 = vmatprep.subr.bf16.mxu0 0
        %690 = vmatpush1.bf16.msra.mxu0 0
        %691 = vmatprep.subr.bf16.mxu0 0
        %692 = vmatpush1.bf16.msra.mxu0 0
        %693 = vmatprep.subr.bf16.mxu0 0
        %694 = vmatpush1.bf16.msra.mxu0 0
        %695 = vmatprep.subr.bf16.mxu0 0
        %696 = vmatpush1.bf16.msra.mxu0 0
        %697 = vmatprep.subr.bf16.mxu0 0
        %698 = vmatpush1.bf16.msra.mxu0 0
        %699 = vmatprep.subr.bf16.mxu0 0
        %700 = vmatpush1.bf16.msra.mxu0 0
        %701 = vmatprep.subr.bf16.mxu0 0
        %702 = vmatpush1.bf16.msra.mxu0 0
        %703 = vmatprep.subr.bf16.mxu0 0
        %704 = vmatpush1.bf16.msra.mxu0 0
        %705 = vmatprep.mubr.bf16.mxu0 0
        %706 = vmatmul.mubr.bf16.gmra.mrb[0].mxu0 %v672
        %v707 = vpop.f32.mrb[0].mxu0
        %v708 = vadd.f32 0.0, %v707
        %v709 = vpop.f32.mrb[0].mxu0
        %v710 = vpop.f32.mrb[0].mxu0
        %v711 = vpop.f32.mrb[0].mxu0
        %712 = vdwg.mxu0
        %v713 = vadd.f32 %v671, %v708
        %v714 = vtanh.pop %v713
        %715 = vst [vmem:[#allocation3 + $0x18] sm:$0xff] %v714
        %716 = vst [vmem:[%s8] sm:$0xff] %v714
        %v717 = vld [vmem:[#allocation3] sm:$0xff]
        %v718 = vld [vmem:[#allocation3 + $0x8] sm:$0xff]
        %v719 = vld [vmem:[#allocation3 + $0x10] sm:$0xff]
        %v720 = vld [vmem:[#allocation3 + $0x18] sm:$0xff]
        %v721 = vpack.c.bf16 %v718, %v717
        %v722 = vpack.c.bf16 %v720, %v719
        %s723 = scalar_lea.vmem [#allocation4], 64
        %v724 = vld [vmem:[%s723] sm:$0xf]
        %v725 = vld [vmem:[%s723 + $0x4] sm:$0xf]
        %v726 = vld [vmem:[%s723 + $0x8] sm:$0xf]
        %v727 = vld [vmem:[%s723 + $0xc] sm:$0xf]
        %v728 = vld [vmem:[%s723 + $0x10] sm:$0xf]
        %v729 = vld [vmem:[%s723 + $0x14] sm:$0xf]
        %v730 = vld [vmem:[%s723 + $0x18] sm:$0xf]
        %v731 = vld [vmem:[%s723 + $0x1c] sm:$0xf]
        %v732 = vld [vmem:[%s723 + $0x20] sm:$0xf]
        %v733 = vld [vmem:[%s723 + $0x24] sm:$0xf]
        %v734 = vld [vmem:[%s723 + $0x28] sm:$0xf]
        %v735 = vld [vmem:[%s723 + $0x2c] sm:$0xf]
        %v736 = vld [vmem:[%s723 + $0x30] sm:$0xf]
        %v737 = vld [vmem:[%s723 + $0x34] sm:$0xf]
        %v738 = vld [vmem:[%s723 + $0x38] sm:$0xf]
        %v739 = vld [vmem:[%s723 + $0x3c] sm:$0xf]
        %s740 = scalar_lea.vmem %s4, 1
        %v741 = vld [vmem:[%s740] sm:$0x1]
        %v743 = vlaneseq
        %v744 = vshrl.u32 %v743, 7
        %v745 = vsub.s32 0, %v744
        %v746 = vrot.slane %v741, %v745
        %v764 = vunpack.c.l.b16 %v724
        %v765 = vunpack.c.l.b16 %v725
        %v766 = vunpack.c.l.b16 %v726
        %v767 = vunpack.c.l.b16 %v727
        %v768 = vunpack.c.l.b16 %v728
        %v769 = vunpack.c.l.b16 %v729
        %v770 = vunpack.c.l.b16 %v730
        %v771 = vunpack.c.l.b16 %v731
        %v772 = vunpack.c.l.b16 %v732
        %v773 = vunpack.c.l.b16 %v733
        %v774 = vunpack.c.l.b16 %v734
        %v775 = vunpack.c.l.b16 %v735
        %v776 = vunpack.c.l.b16 %v736
        %v777 = vunpack.c.l.b16 %v737
        %v778 = vunpack.c.l.b16 %v738
        %v779 = vunpack.c.l.b16 %v739
        %v780 = vpack.c.b16 %v765, %v764
        %v781 = vpack.c.b16 %v767, %v766
        %v782 = vpack.c.b16 %v769, %v768
        %v783 = vpack.c.b16 %v771, %v770
        %v784 = vpack.c.b16 %v773, %v772
        %v785 = vpack.c.b16 %v775, %v774
        %v786 = vpack.c.b16 %v777, %v776
        %v787 = vpack.c.b16 %v779, %v778
        %796 = vmatprep.subr.bf16.mxu0 0
        %797 = vmatpush1.bf16.msra.mxu0 %v780
        %798 = vmatprep.subr.bf16.mxu0 0
        %799 = vmatpush1.bf16.msra.mxu0 %v781
        %800 = vmatprep.subr.bf16.mxu0 0
        %801 = vmatpush1.bf16.msra.mxu0 %v782
        %802 = vmatprep.subr.bf16.mxu0 0
        %803 = vmatpush1.bf16.msra.mxu0 %v783
        %804 = vmatprep.subr.bf16.mxu0 0
        %805 = vmatpush1.bf16.msra.mxu0 %v784
        %806 = vmatprep.subr.bf16.mxu0 0
        %807 = vmatpush1.bf16.msra.mxu0 %v785
        %808 = vmatprep.subr.bf16.mxu0 0
        %809 = vmatpush1.bf16.msra.mxu0 %v786
        %810 = vmatprep.subr.bf16.mxu0 0
        %811 = vmatpush1.bf16.msra.mxu0 %v787
        %812 = vmatprep.subr.bf16.mxu0 0
        %813 = vmatpush1.bf16.msra.mxu0 0
        %814 = vmatprep.subr.bf16.mxu0 0
        %815 = vmatpush1.bf16.msra.mxu0 0
        %816 = vmatprep.subr.bf16.mxu0 0
        %817 = vmatpush1.bf16.msra.mxu0 0
        %818 = vmatprep.subr.bf16.mxu0 0
        %819 = vmatpush1.bf16.msra.mxu0 0
        %820 = vmatprep.subr.bf16.mxu0 0
        %821 = vmatpush1.bf16.msra.mxu0 0
        %822 = vmatprep.subr.bf16.mxu0 0
        %823 = vmatpush1.bf16.msra.mxu0 0
        %824 = vmatprep.subr.bf16.mxu0 0
        %825 = vmatpush1.bf16.msra.mxu0 0
        %826 = vmatprep.subr.bf16.mxu0 0
        %827 = vmatpush1.bf16.msra.mxu0 0
        %828 = vmatprep.mubr.bf16.mxu0 0
        %829 = vmatmul.mubr.bf16.gmra.mrb[0].mxu0 %v721
        %v830 = vpop.f32.mrb[0].mxu0
        %v831 = vadd.f32 %v746, %v830
        %v832 = vpop.f32.mrb[0].mxu0
        %v833 = vpop.f32.mrb[0].mxu0
        %v834 = vadd.f32 %v746, %v833
        %v835 = vpop.f32.mrb[0].mxu0
        %836 = vmatprep.mubr.bf16.mxu0 0
        %837 = vmatmul.mubr.bf16.gmra.mrb[0].mxu0 %v722
        %v838 = vpop.f32.mrb[0].mxu0
        %v839 = vadd.f32 %v746, %v838
        %v840 = vpop.f32.mrb[0].mxu0
        %v841 = vpop.f32.mrb[0].mxu0
        %v842 = vadd.f32 %v746, %v841
        %v843 = vpop.f32.mrb[0].mxu0
        %844 = vdwg.mxu0
        %845 = vst [vmem:[#allocation2] sm:$0xff] %v831
        %846 = vst [vmem:[#allocation2 + $0x8] sm:$0xff] %v834
        %847 = vst [vmem:[#allocation2 + $0x10] sm:$0xff] %v839
        %848 = vst [vmem:[#allocation2 + $0x18] sm:$0xff] %v842
        %s849 = scalar_lea.vmem %s3, 64
        %v850 = vld [vmem:[%s849] sm:$0xf]
        %v851 = vld [vmem:[%s849 + $0x4] sm:$0xf]
        %v852 = vld [vmem:[%s849 + $0x8] sm:$0xf]
        %v853 = vld [vmem:[%s849 + $0xc] sm:$0xf]
        %v854 = vld [vmem:[%s849 + $0x10] sm:$0xf]
        %v855 = vld [vmem:[%s849 + $0x14] sm:$0xf]
        %v856 = vld [vmem:[%s849 + $0x18] sm:$0xf]
        %v857 = vld [vmem:[%s849 + $0x1c] sm:$0xf]
        %v858 = vld [vmem:[%s849 + $0x20] sm:$0xf]
        %v859 = vld [vmem:[%s849 + $0x24] sm:$0xf]
        %v860 = vld [vmem:[%s849 + $0x28] sm:$0xf]
        %v861 = vld [vmem:[%s849 + $0x2c] sm:$0xf]
        %v862 = vld [vmem:[%s849 + $0x30] sm:$0xf]
        %v863 = vld [vmem:[%s849 + $0x34] sm:$0xf]
        %v864 = vld [vmem:[%s849 + $0x38] sm:$0xf]
        %v865 = vld [vmem:[%s849 + $0x3c] sm:$0xf]
        %s866 = scalar_lea.vmem %s8, 8
        %v867 = vld [vmem:[%s866] sm:$0xff]
        %v868 = vld [vmem:[#allocation2] sm:$0xff]
        %v869 = vpack.c.bf16 %v867, %v867
        %v886 = vunpack.c.l.b16 %v850
        %v887 = vunpack.c.l.b16 %v851
        %v888 = vunpack.c.l.b16 %v852
        %v889 = vunpack.c.l.b16 %v853
        %v890 = vunpack.c.l.b16 %v854
        %v891 = vunpack.c.l.b16 %v855
        %v892 = vunpack.c.l.b16 %v856
        %v893 = vunpack.c.l.b16 %v857
        %v894 = vunpack.c.l.b16 %v858
        %v895 = vunpack.c.l.b16 %v859
        %v896 = vunpack.c.l.b16 %v860
        %v897 = vunpack.c.l.b16 %v861
        %v898 = vunpack.c.l.b16 %v862
        %v899 = vunpack.c.l.b16 %v863
        %v900 = vunpack.c.l.b16 %v864
        %v901 = vunpack.c.l.b16 %v865
        %v902 = vpack.c.b16 %v887, %v886
        %v903 = vpack.c.b16 %v889, %v888
        %v904 = vpack.c.b16 %v891, %v890
        %v905 = vpack.c.b16 %v893, %v892
        %v906 = vpack.c.b16 %v895, %v894
        %v907 = vpack.c.b16 %v897, %v896
        %v908 = vpack.c.b16 %v899, %v898
        %v909 = vpack.c.b16 %v901, %v900
        %918 = vmatprep.subr.bf16.mxu0 0
        %919 = vmatpush1.bf16.msra.mxu0 %v902
        %920 = vmatprep.subr.bf16.mxu0 0
        %921 = vmatpush1.bf16.msra.mxu0 %v903
        %922 = vmatprep.subr.bf16.mxu0 0
        %923 = vmatpush1.bf16.msra.mxu0 %v904
        %924 = vmatprep.subr.bf16.mxu0 0
        %925 = vmatpush1.bf16.msra.mxu0 %v905
        %926 = vmatprep.subr.bf16.mxu0 0
        %927 = vmatpush1.bf16.msra.mxu0 %v906
        %928 = vmatprep.subr.bf16.mxu0 0
        %929 = vmatpush1.bf16.msra.mxu0 %v907
        %930 = vmatprep.subr.bf16.mxu0 0
        %931 = vmatpush1.bf16.msra.mxu0 %v908
        %932 = vmatprep.subr.bf16.mxu0 0
        %933 = vmatpush1.bf16.msra.mxu0 %v909
        %934 = vmatprep.subr.bf16.mxu0 0
        %935 = vmatpush1.bf16.msra.mxu0 0
        %936 = vmatprep.subr.bf16.mxu0 0
        %937 = vmatpush1.bf16.msra.mxu0 0
        %938 = vmatprep.subr.bf16.mxu0 0
        %939 = vmatpush1.bf16.msra.mxu0 0
        %940 = vmatprep.subr.bf16.mxu0 0
        %941 = vmatpush1.bf16.msra.mxu0 0
        %942 = vmatprep.subr.bf16.mxu0 0
        %943 = vmatpush1.bf16.msra.mxu0 0
        %944 = vmatprep.subr.bf16.mxu0 0
        %945 = vmatpush1.bf16.msra.mxu0 0
        %946 = vmatprep.subr.bf16.mxu0 0
        %947 = vmatpush1.bf16.msra.mxu0 0
        %948 = vmatprep.subr.bf16.mxu0 0
        %949 = vmatpush1.bf16.msra.mxu0 0
        %950 = vmatprep.mubr.bf16.mxu0 0
        %951 = vmatmul.mubr.bf16.gmra.mrb[0].mxu0 %v869
        %v952 = vpop.f32.mrb[0].mxu0
        %v953 = vadd.f32 0.0, %v952
        %v954 = vpop.f32.mrb[0].mxu0
        %v955 = vpop.f32.mrb[0].mxu0
        %v956 = vpop.f32.mrb[0].mxu0
        %957 = vdwg.mxu0
        %v958 = vadd.f32 %v868, %v953
        %v959 = vtanh.pop %v958
        %960 = vst [vmem:[#allocation3] sm:$0xff] %v959
        %v961 = vld [vmem:[#allocation2 + $0x8] sm:$0xff]
        %v962 = vpack.c.bf16 %v959, %v959
        %963 = vmatprep.subr.bf16.mxu0 0
        %964 = vmatpush1.bf16.msra.mxu0 %v902
        %965 = vmatprep.subr.bf16.mxu0 0
        %966 = vmatpush1.bf16.msra.mxu0 %v903
        %967 = vmatprep.subr.bf16.mxu0 0
        %968 = vmatpush1.bf16.msra.mxu0 %v904
        %969 = vmatprep.subr.bf16.mxu0 0
        %970 = vmatpush1.bf16.msra.mxu0 %v905
        %971 = vmatprep.subr.bf16.mxu0 0
        %972 = vmatpush1.bf16.msra.mxu0 %v906
        %973 = vmatprep.subr.bf16.mxu0 0
        %974 = vmatpush1.bf16.msra.mxu0 %v907
        %975 = vmatprep.subr.bf16.mxu0 0
        %976 = vmatpush1.bf16.msra.mxu0 %v908
        %977 = vmatprep.subr.bf16.mxu0 0
        %978 = vmatpush1.bf16.msra.mxu0 %v909
        %979 = vmatprep.subr.bf16.mxu0 0
        %980 = vmatpush1.bf16.msra.mxu0 0
        %981 = vmatprep.subr.bf16.mxu0 0
        %982 = vmatpush1.bf16.msra.mxu0 0
        %983 = vmatprep.subr.bf16.mxu0 0
        %984 = vmatpush1.bf16.msra.mxu0 0
        %985 = vmatprep.subr.bf16.mxu0 0
        %986 = vmatpush1.bf16.msra.mxu0 0
        %987 = vmatprep.subr.bf16.mxu0 0
        %988 = vmatpush1.bf16.msra.mxu0 0
        %989 = vmatprep.subr.bf16.mxu0 0
        %990 = vmatpush1.bf16.msra.mxu0 0
        %991 = vmatprep.subr.bf16.mxu0 0
        %992 = vmatpush1.bf16.msra.mxu0 0
        %993 = vmatprep.subr.bf16.mxu0 0
        %994 = vmatpush1.bf16.msra.mxu0 0
        %995 = vmatprep.mubr.bf16.mxu0 0
        %996 = vmatmul.mubr.bf16.gmra.mrb[0].mxu0 %v962
        %v997 = vpop.f32.mrb[0].mxu0
        %v998 = vadd.f32 0.0, %v997
        %v999 = vpop.f32.mrb[0].mxu0
        %v1000 = vpop.f32.mrb[0].mxu0
        %v1001 = vpop.f32.mrb[0].mxu0
        %1002 = vdwg.mxu0
        %v1003 = vadd.f32 %v961, %v998
        %v1004 = vtanh.pop %v1003
        %1005 = vst [vmem:[#allocation3 + $0x8] sm:$0xff] %v1004
        %v1006 = vld [vmem:[#allocation2 + $0x10] sm:$0xff]
        %v1007 = vpack.c.bf16 %v1004, %v1004
        %1008 = vmatprep.subr.bf16.mxu0 0
        %1009 = vmatpush1.bf16.msra.mxu0 %v902
        %1010 = vmatprep.subr.bf16.mxu0 0
        %1011 = vmatpush1.bf16.msra.mxu0 %v903
        %1012 = vmatprep.subr.bf16.mxu0 0
        %1013 = vmatpush1.bf16.msra.mxu0 %v904
        %1014 = vmatprep.subr.bf16.mxu0 0
        %1015 = vmatpush1.bf16.msra.mxu0 %v905
        %1016 = vmatprep.subr.bf16.mxu0 0
        %1017 = vmatpush1.bf16.msra.mxu0 %v906
        %1018 = vmatprep.subr.bf16.mxu0 0
        %1019 = vmatpush1.bf16.msra.mxu0 %v907
        %1020 = vmatprep.subr.bf16.mxu0 0
        %1021 = vmatpush1.bf16.msra.mxu0 %v908
        %1022 = vmatprep.subr.bf16.mxu0 0
        %1023 = vmatpush1.bf16.msra.mxu0 %v909
        %1024 = vmatprep.subr.bf16.mxu0 0
        %1025 = vmatpush1.bf16.msra.mxu0 0
        %1026 = vmatprep.subr.bf16.mxu0 0
        %1027 = vmatpush1.bf16.msra.mxu0 0
        %1028 = vmatprep.subr.bf16.mxu0 0
        %1029 = vmatpush1.bf16.msra.mxu0 0
        %1030 = vmatprep.subr.bf16.mxu0 0
        %1031 = vmatpush1.bf16.msra.mxu0 0
        %1032 = vmatprep.subr.bf16.mxu0 0
        %1033 = vmatpush1.bf16.msra.mxu0 0
        %1034 = vmatprep.subr.bf16.mxu0 0
        %1035 = vmatpush1.bf16.msra.mxu0 0
        %1036 = vmatprep.subr.bf16.mxu0 0
        %1037 = vmatpush1.bf16.msra.mxu0 0
        %1038 = vmatprep.subr.bf16.mxu0 0
        %1039 = vmatpush1.bf16.msra.mxu0 0
        %1040 = vmatprep.mubr.bf16.mxu0 0
        %1041 = vmatmul.mubr.bf16.gmra.mrb[0].mxu0 %v1007
        %v1042 = vpop.f32.mrb[0].mxu0
        %v1043 = vadd.f32 0.0, %v1042
        %v1044 = vpop.f32.mrb[0].mxu0
        %v1045 = vpop.f32.mrb[0].mxu0
        %v1046 = vpop.f32.mrb[0].mxu0
        %1047 = vdwg.mxu0
        %v1048 = vadd.f32 %v1006, %v1043
        %v1049 = vtanh.pop %v1048
        %1050 = vst [vmem:[#allocation3 + $0x10] sm:$0xff] %v1049
        %v1051 = vld [vmem:[#allocation2 + $0x18] sm:$0xff]
        %v1052 = vpack.c.bf16 %v1049, %v1049
        %1053 = vmatprep.subr.bf16.mxu0 0
        %1054 = vmatpush1.bf16.msra.mxu0 %v902
        %1055 = vmatprep.subr.bf16.mxu0 0
        %1056 = vmatpush1.bf16.msra.mxu0 %v903
        %1057 = vmatprep.subr.bf16.mxu0 0
        %1058 = vmatpush1.bf16.msra.mxu0 %v904
        %1059 = vmatprep.subr.bf16.mxu0 0
        %1060 = vmatpush1.bf16.msra.mxu0 %v905
        %1061 = vmatprep.subr.bf16.mxu0 0
        %1062 = vmatpush1.bf16.msra.mxu0 %v906
        %1063 = vmatprep.subr.bf16.mxu0 0
        %1064 = vmatpush1.bf16.msra.mxu0 %v907
        %1065 = vmatprep.subr.bf16.mxu0 0
        %1066 = vmatpush1.bf16.msra.mxu0 %v908
        %1067 = vmatprep.subr.bf16.mxu0 0
        %1068 = vmatpush1.bf16.msra.mxu0 %v909
        %1069 = vmatprep.subr.bf16.mxu0 0
        %1070 = vmatpush1.bf16.msra.mxu0 0
        %1071 = vmatprep.subr.bf16.mxu0 0
        %1072 = vmatpush1.bf16.msra.mxu0 0
        %1073 = vmatprep.subr.bf16.mxu0 0
        %1074 = vmatpush1.bf16.msra.mxu0 0
        %1075 = vmatprep.subr.bf16.mxu0 0
        %1076 = vmatpush1.bf16.msra.mxu0 0
        %1077 = vmatprep.subr.bf16.mxu0 0
        %1078 = vmatpush1.bf16.msra.mxu0 0
        %1079 = vmatprep.subr.bf16.mxu0 0
        %1080 = vmatpush1.bf16.msra.mxu0 0
        %1081 = vmatprep.subr.bf16.mxu0 0
        %1082 = vmatpush1.bf16.msra.mxu0 0
        %1083 = vmatprep.subr.bf16.mxu0 0
        %1084 = vmatpush1.bf16.msra.mxu0 0
        %1085 = vmatprep.mubr.bf16.mxu0 0
        %1086 = vmatmul.mubr.bf16.gmra.mrb[0].mxu0 %v1052
        %v1087 = vpop.f32.mrb[0].mxu0
        %v1088 = vadd.f32 0.0, %v1087
        %v1089 = vpop.f32.mrb[0].mxu0
        %v1090 = vpop.f32.mrb[0].mxu0
        %v1091 = vpop.f32.mrb[0].mxu0
        %1092 = vdwg.mxu0
        %v1093 = vadd.f32 %v1051, %v1088
        %v1094 = vtanh.pop %v1093
        %1095 = vst [vmem:[#allocation3 + $0x18] sm:$0xff] %v1094
        %1096 = vst [vmem:[%s866] sm:$0xff] %v1094
        %v1097 = vld [vmem:[#allocation3] sm:$0xff]
        %v1098 = vld [vmem:[#allocation3 + $0x8] sm:$0xff]
        %v1099 = vld [vmem:[#allocation3 + $0x10] sm:$0xff]
        %v1100 = vld [vmem:[#allocation3 + $0x18] sm:$0xff]
        %v1101 = vpack.c.bf16 %v1098, %v1097
        %v1102 = vpack.c.bf16 %v1100, %v1099
        %v1103 = vld [vmem:[%s5] sm:$0xf]
        %v1104 = vld [vmem:[%s5 + $0x4] sm:$0xf]
        %v1105 = vld [vmem:[%s5 + $0x8] sm:$0xf]
        %v1106 = vld [vmem:[%s5 + $0xc] sm:$0xf]
        %v1107 = vld [vmem:[%s5 + $0x10] sm:$0xf]
        %v1108 = vld [vmem:[%s5 + $0x14] sm:$0xf]
        %v1109 = vld [vmem:[%s5 + $0x18] sm:$0xf]
        %v1110 = vld [vmem:[%s5 + $0x1c] sm:$0xf]
        %v1111 = vld [vmem:[%s5 + $0x20] sm:$0xf]
        %v1112 = vld [vmem:[%s5 + $0x24] sm:$0xf]
        %v1113 = vld [vmem:[%s5 + $0x28] sm:$0xf]
        %v1114 = vld [vmem:[%s5 + $0x2c] sm:$0xf]
        %v1115 = vld [vmem:[%s5 + $0x30] sm:$0xf]
        %v1116 = vld [vmem:[%s5 + $0x34] sm:$0xf]
        %v1117 = vld [vmem:[%s5 + $0x38] sm:$0xf]
        %v1118 = vld [vmem:[%s5 + $0x3c] sm:$0xf]
        %v1119 = vld [vmem:[%s6] sm:$0x1]
        %v1121 = vlaneseq
        %v1122 = vshrl.u32 %v1121, 7
        %v1123 = vsub.s32 0, %v1122
        %v1124 = vrot.slane %v1119, %v1123
        %v1142 = vunpack.c.l.b16 %v1103
        %v1143 = vunpack.c.l.b16 %v1104
        %v1144 = vunpack.c.l.b16 %v1105
        %v1145 = vunpack.c.l.b16 %v1106
        %v1146 = vunpack.c.l.b16 %v1107
        %v1147 = vunpack.c.l.b16 %v1108
        %v1148 = vunpack.c.l.b16 %v1109
        %v1149 = vunpack.c.l.b16 %v1110
        %v1150 = vunpack.c.l.b16 %v1111
        %v1151 = vunpack.c.l.b16 %v1112
        %v1152 = vunpack.c.l.b16 %v1113
        %v1153 = vunpack.c.l.b16 %v1114
        %v1154 = vunpack.c.l.b16 %v1115
        %v1155 = vunpack.c.l.b16 %v1116
        %v1156 = vunpack.c.l.b16 %v1117
        %v1157 = vunpack.c.l.b16 %v1118
        %v1158 = vpack.c.b16 %v1143, %v1142
        %v1159 = vpack.c.b16 %v1145, %v1144
        %v1160 = vpack.c.b16 %v1147, %v1146
        %v1161 = vpack.c.b16 %v1149, %v1148
        %v1162 = vpack.c.b16 %v1151, %v1150
        %v1163 = vpack.c.b16 %v1153, %v1152
        %v1164 = vpack.c.b16 %v1155, %v1154
        %v1165 = vpack.c.b16 %v1157, %v1156
        %1174 = vmatprep.subr.bf16.mxu0 0
        %1175 = vmatpush1.bf16.msra.mxu0 %v1158
        %1176 = vmatprep.subr.bf16.mxu0 0
        %1177 = vmatpush1.bf16.msra.mxu0 %v1159
        %1178 = vmatprep.subr.bf16.mxu0 0
        %1179 = vmatpush1.bf16.msra.mxu0 %v1160
        %1180 = vmatprep.subr.bf16.mxu0 0
        %1181 = vmatpush1.bf16.msra.mxu0 %v1161
        %1182 = vmatprep.subr.bf16.mxu0 0
        %1183 = vmatpush1.bf16.msra.mxu0 %v1162
        %1184 = vmatprep.subr.bf16.mxu0 0
        %1185 = vmatpush1.bf16.msra.mxu0 %v1163
        %1186 = vmatprep.subr.bf16.mxu0 0
        %1187 = vmatpush1.bf16.msra.mxu0 %v1164
        %1188 = vmatprep.subr.bf16.mxu0 0
        %1189 = vmatpush1.bf16.msra.mxu0 %v1165
        %1190 = vmatprep.subr.bf16.mxu0 0
        %1191 = vmatpush1.bf16.msra.mxu0 0
        %1192 = vmatprep.subr.bf16.mxu0 0
        %1193 = vmatpush1.bf16.msra.mxu0 0
        %1194 = vmatprep.subr.bf16.mxu0 0
        %1195 = vmatpush1.bf16.msra.mxu0 0
        %1196 = vmatprep.subr.bf16.mxu0 0
        %1197 = vmatpush1.bf16.msra.mxu0 0
        %1198 = vmatprep.subr.bf16.mxu0 0
        %1199 = vmatpush1.bf16.msra.mxu0 0
        %1200 = vmatprep.subr.bf16.mxu0 0
        %1201 = vmatpush1.bf16.msra.mxu0 0
        %1202 = vmatprep.subr.bf16.mxu0 0
        %1203 = vmatpush1.bf16.msra.mxu0 0
        %1204 = vmatprep.subr.bf16.mxu0 0
        %1205 = vmatpush1.bf16.msra.mxu0 0
        %1206 = vmatprep.mubr.bf16.mxu0 0
        %1207 = vmatmul.mubr.bf16.gmra.mrb[0].mxu0 %v1101
        %v1208 = vpop.f32.mrb[0].mxu0
        %v1209 = vadd.f32 %v1124, %v1208
        %v1210 = vpop.f32.mrb[0].mxu0
        %v1211 = vpop.f32.mrb[0].mxu0
        %v1212 = vadd.f32 %v1124, %v1211
        %v1213 = vpop.f32.mrb[0].mxu0
        %1214 = vmatprep.mubr.bf16.mxu0 0
        %1215 = vmatmul.mubr.bf16.gmra.mrb[0].mxu0 %v1102
        %v1216 = vpop.f32.mrb[0].mxu0
        %v1217 = vadd.f32 %v1124, %v1216
        %v1218 = vpop.f32.mrb[0].mxu0
        %v1219 = vpop.f32.mrb[0].mxu0
        %v1220 = vadd.f32 %v1124, %v1219
        %v1221 = vpop.f32.mrb[0].mxu0
        %1222 = vdwg.mxu0
        %1223 = vst [vmem:[%s320] sm:$0xff] %v1209
        %1224 = vst [vmem:[%s320 + $0x8] sm:$0xff] %v1212
        %1225 = vst [vmem:[%s320 + $0x10] sm:$0xff] %v1217
        %1226 = vst [vmem:[%s320 + $0x18] sm:$0xff] %v1220
        %s1227 = smul.u32 4, %s21
        %p1228 = scmp.lt.s32.totalorder %s1227, 7
        %s1229 = scalar_select %p1228, %s1227, 7
        %s1230 = smul.addr %s1229, 8
        %s1231 = scalar_lea.vmem %s7, %s1230
        // Predicated region
        $region57: #{char_rnn_forward.1} parent=47 // pred_check
          %p1232 = pneg %p191
        $region58: #{char_rnn_forward.1} parent=47 // pred_check_branch
          %1234 = sbr.rel (%p1232) target = $region60
        $region59: #{char_rnn_forward.1} parent=47 // pred_region
          %s1235 = smul.u32 4, %s21
        $region60: #{char_rnn_forward.1} parent=47 // pred_fallthru
          _
        // Predicated region
        $region61: #{char_rnn_forward.1} parent=47 // pred_check
          %p1236 = pneg %p212
        $region62: #{char_rnn_forward.1} parent=47 // pred_check_branch
          %1238 = sbr.rel (%p1236) target = $region64
        $region63: #{char_rnn_forward.1} parent=47 // pred_region
          _
        $region64: #{char_rnn_forward.1} parent=47 // pred_fallthru
          _
        // Predicated region
        $region65: #{char_rnn_forward.1} parent=47 // pred_check
          %p1239 = pneg %p212
        $region66: #{char_rnn_forward.1} parent=47 // pred_check_branch
          %1241 = sbr.rel (%p1239) target = $region68
        $region67: #{char_rnn_forward.1} parent=47 // pred_region
          _
        $region68: #{char_rnn_forward.1} parent=47 // pred_fallthru
          _
      $region48: #{char_rnn_forward.1} parent=5 // pred_fallthru
        _
      %p1242 = scmp.le.s32.totalorder 2, %s16
      // Predicated region
      $region69: #{char_rnn_forward.1} parent=5 // pred_check
        %p1243 = pneg %p1242
      $region70: #{char_rnn_forward.1} parent=5 // pred_check_branch
        %1245 = sbr.rel (%p1243) target = $region72
      $region71: #{char_rnn_forward.1} parent=5 // pred_region
        %s1246 = ssub.s32 %s16, 2
        // Predicated region
        $region73: #{char_rnn_forward.1} parent=71 // pred_check
          %p1247 = pneg %p197
        $region74: #{char_rnn_forward.1} parent=71 // pred_check_branch
          %1249 = sbr.rel (%p1247) target = $region76
        $region75: #{char_rnn_forward.1} parent=71 // pred_region
          %s1250 = smul.u32 4, %s22
          %p1251 = scmp.lt.s32.totalorder %s1250, 7
          %s1252 = scalar_select %p1251, %s1250, 7
          %s1253 = smul.addr %s1252, 8
          %s1254 = scalar_lea.vmem %s7, %s1253
        $region76: #{char_rnn_forward.1} parent=71 // pred_fallthru
          _
      $region72: #{char_rnn_forward.1} parent=5 // pred_fallthru
        _
    $region6: #{char_rnn_forward.1} parent=1 // loop_footer
      %s20 = sadd.s32 1, %s16
    $region7: #{char_rnn_forward.1} parent=1 // loop_footer_branch
      %15 = sbr.rel target = $region3
    $region8: #{char_rnn_forward.1} parent=1 // loop_exit
      _
    %1255 = vsyncpa [#allocation5], 1
    %s1256 = scalar_lea.sflag [#allocation5], 1
    %1257 = vsyncpa %s1256, 1

</llo_original>
